<compile_context>
chip_gen: v5e
topology: v5e:2x2
jax: 0.10.0
libtpu: 0.0.40
codegen_flags: <defaults>
</compile_context>

<pallas_src>
import functools
import math

import jax
import jax.numpy as jnp
from jax.experimental import pallas as pl
from jax.experimental.pallas import tpu as pltpu


def _round_up(v, m):
    return ((v + m - 1) // m) * m


# ---------------------------------------------------------------------------
# Pallas hot path: K-tiled (columns @ weight) matmul, bf16 in / f32 accumulate.
# Grid = (M tiles, N tiles, K tiles); K is innermost ("arbitrary") with a
# persistent f32 VMEM accumulator, init/finalize gated by pl.when.
# ---------------------------------------------------------------------------
def _mm_kernel(a_ref, b_ref, o_ref, acc_ref):
    @pl.when(pl.program_id(2) == 0)
    def _init():
        acc_ref[...] = jnp.zeros_like(acc_ref)

    acc_ref[...] += jnp.dot(a_ref[...], b_ref[...],
                            preferred_element_type=jnp.float32)

    @pl.when(pl.program_id(2) == pl.num_programs(2) - 1)
    def _done():
        o_ref[...] = acc_ref[...].astype(o_ref.dtype)


def _mm_bias_kernel(a_ref, b_ref, bias_ref, o_ref, acc_ref):
    @pl.when(pl.program_id(2) == 0)
    def _init():
        acc_ref[...] = jnp.zeros_like(acc_ref)

    acc_ref[...] += jnp.dot(a_ref[...], b_ref[...],
                            preferred_element_type=jnp.float32)

    @pl.when(pl.program_id(2) == pl.num_programs(2) - 1)
    def _done():
        o_ref[...] = (acc_ref[...] + bias_ref[...]).astype(o_ref.dtype)


def pallas_matmul(a, b, bias=None, *, tm=512, out_dtype=jnp.float32):
    """a: (M, K), b: (K, N), optional bias (N,) -> (M, N) in out_dtype.

    A/B are cast to bf16 (halves HBM traffic, bf16 MXU), accumulation is f32.
    N and K are zero-padded up to multiples of 128 so the output is lane-dense
    and the reduction feeds the MXU aligned tiles.
    """
    M, K = a.shape
    Kb, N = b.shape
    assert K == Kb
    a = a.astype(jnp.bfloat16)
    b = b.astype(jnp.bfloat16)

    # Lane-dense output: pad N (out channels) up to a multiple of 128.
    Np = _round_up(N, 128)
    if Np != N:
        b = jnp.pad(b, ((0, 0), (0, Np - N)))
    tn = Np if Np <= 512 else (256 if Np % 256 == 0 else 128)

    # Reduction tiling: pad K to a multiple of 128 (zeros, so padding is inert)
    # and pick the largest tile in {512, 256, 128} that divides it.
    Kp = _round_up(K, 128)
    if Kp != K:
        a = jnp.pad(a, ((0, 0), (0, Kp - K)))
        b = jnp.pad(b, ((0, Kp - K), (0, 0)))
    tk = next(t for t in (512, 256, 128) if Kp % t == 0)

    tm_eff = min(tm, _round_up(M, 128))
    # M remainder: cdiv grid; the partial last block's writeback is masked by
    # Pallas, so no HBM-side padding pass over the (large) columns tensor.
    grid = (pl.cdiv(M, tm_eff), Np // tn, Kp // tk)

    in_specs = [
        pl.BlockSpec((tm_eff, tk), lambda i, j, k: (i, k)),
        pl.BlockSpec((tk, tn), lambda i, j, k: (k, j)),
    ]
    args = [a, b]
    if bias is None:
        kernel = _mm_kernel
    else:
        kernel = _mm_bias_kernel
        bias_p = jnp.pad(bias.astype(jnp.float32), (0, Np - N)).reshape(1, Np)
        in_specs.append(pl.BlockSpec((1, tn), lambda i, j, k: (0, j)))
        args.append(bias_p)

    out = pl.pallas_call(
        kernel,
        out_shape=jax.ShapeDtypeStruct((M, Np), out_dtype),
        grid=grid,
        in_specs=in_specs,
        out_specs=pl.BlockSpec((tm_eff, tn), lambda i, j, k: (i, j)),
        scratch_shapes=[pltpu.VMEM((tm_eff, tn), jnp.float32)],
        compiler_params=pltpu.CompilerParams(
            dimension_semantics=("parallel", "parallel", "arbitrary"),
            vmem_limit_bytes=32 * 1024 * 1024,
        ),
    )(*args)
    return out[:, :N] if Np != N else out


# ---------------------------------------------------------------------------
# Regular im2col for the offset-predicting Conv2d, channels-last columns:
# returns (N*Ho*Wo, kH*kW*C) with [k][c] reduction order (c on lanes).
# ---------------------------------------------------------------------------
def im2col_nhwc(x, kH, kW, stride, padding, dilation, compute_dtype=jnp.bfloat16):
    N, C, H, W = x.shape
    sh, sw = stride
    ph, pw = padding
    dh, dw = dilation
    Ho = (H + 2 * ph - (dh * (kH - 1) + 1)) // sh + 1
    Wo = (W + 2 * pw - (dw * (kW - 1) + 1)) // sw + 1
    x_cl = jnp.transpose(x, (0, 2, 3, 1)).astype(compute_dtype)     # (N, H, W, C)
    xp = jnp.pad(x_cl, ((0, 0), (ph, ph), (pw, pw), (0, 0)))
    patches = []
    for i in range(kH):
        for j in range(kW):
            patches.append(xp[:, i * dh: i * dh + (Ho - 1) * sh + 1: sh,
                               j * dw: j * dw + (Wo - 1) * sw + 1: sw, :])
    cols = jnp.stack(patches, axis=3)                                # (N, Ho, Wo, K, C)
    return cols.reshape(N * Ho * Wo, kH * kW * C), Ho, Wo


def conv2d_nhwc_pallas(x, w, bias, stride, padding, dilation):
    """Standard Conv2d (x: NCHW, w: OIHW) -> NHWC output (N, Ho, Wo, O), f32."""
    N, C, H, W = x.shape
    Cout, Cin, kH, kW = w.shape
    a, Ho, Wo = im2col_nhwc(x, kH, kW, stride, padding, dilation)
    b = jnp.transpose(w, (2, 3, 1, 0)).reshape(kH * kW * Cin, Cout)  # rows = [k][c]
    out = pallas_matmul(a, b, bias=bias)
    return out.reshape(N, Ho, Wo, Cout), Ho, Wo


# ---------------------------------------------------------------------------
# Deformable im2col: bilinear sampling at offset-shifted taps, generated
# directly in channels-last (N, Ho, Wo, K, C) layout.
# TODO(synk): the data-dependent bilinear gather stays as vectorized XLA glue;
# fusing it into the Pallas kernel (implicit GEMM) is the remaining win.
# ---------------------------------------------------------------------------
def deform_im2col_nhwc(x, offset_nhwc, kH, kW, stride, padding, dilation,
                       deform_groups, compute_dtype=jnp.bfloat16):
    N, C, H, W = x.shape
    _, Ho, Wo, _ = offset_nhwc.shape
    sh, sw = stride
    ph, pw = padding
    dh, dw = dilation
    DG = deform_groups
    Cpg = C // DG
    K = kH * kW

    # mmcv v1 offset channel layout: c = dg*2*K + 2*k + {0: y, 1: x}
    off = offset_nhwc.reshape(N, Ho, Wo, DG, K, 2).astype(jnp.float32)
    off_y = jnp.transpose(off[..., 0], (0, 3, 1, 2, 4))   # (N, DG, Ho, Wo, K)
    off_x = jnp.transpose(off[..., 1], (0, 3, 1, 2, 4))

    ki = (jnp.arange(K) // kW).astype(jnp.float32) * dh
    kj = (jnp.arange(K) % kW).astype(jnp.float32) * dw
    base_y = jnp.arange(Ho, dtype=jnp.float32) * sh - ph
    base_x = jnp.arange(Wo, dtype=jnp.float32) * sw - pw

    p_y = off_y + ki[None, None, None, None, :] + base_y[None, None, :, None, None]
    p_x = off_x + kj[None, None, None, None, :] + base_x[None, None, None, :, None]

    y0 = jnp.floor(p_y)
    x0 = jnp.floor(p_x)
    ly = p_y - y0
    lx = p_x - x0
    hy = 1.0 - ly
    hx = 1.0 - lx
    y0i = y0.astype(jnp.int32)
    x0i = x0.astype(jnp.int32)
    y1i = y0i + 1
    x1i = x0i + 1

    # Channels-last source, one slab per deform group: (N*DG, H*W, Cpg).
    x_cl = jnp.transpose(x, (0, 2, 3, 1)).reshape(N, H * W, DG, Cpg)
    x_cl = jnp.transpose(x_cl, (0, 2, 1, 3)).reshape(N * DG, H * W, Cpg)
    x_cl = x_cl.astype(compute_dtype)

    # Gather whole channel rows (C on lanes, no index broadcast over channels).
    gather_rows = jax.vmap(lambda src, ind: jnp.take(src, ind, axis=0))

    def corner(yi, xi, wgt):
        valid = ((yi >= 0) & (yi < H) & (xi >= 0) & (xi < W)).astype(jnp.float32)
        yc = jnp.clip(yi, 0, H - 1)
        xc = jnp.clip(xi, 0, W - 1)
        idx = (yc * W + xc).reshape(N * DG, Ho * Wo * K)
        vals = gather_rows(x_cl, idx)                        # (N*DG, Ho*Wo*K, Cpg)
        w = (wgt * valid).reshape(N * DG, Ho * Wo * K, 1)
        return vals.astype(jnp.float32) * w

    cols = corner(y0i, x0i, hy * hx)
    cols = cols + corner(y0i, x1i, hy * lx)
    cols = cols + corner(y1i, x0i, ly * hx)
    cols = cols + corner(y1i, x1i, ly * lx)
    cols = cols.astype(compute_dtype)

    # (N*DG, Ho*Wo*K, Cpg) -> (N, Ho, Wo, K, DG*Cpg) == (N, Ho, Wo, K, C).
    cols = cols.reshape(N, DG, Ho, Wo, K, Cpg)
    cols = jnp.transpose(cols, (0, 2, 3, 4, 1, 5))           # free when DG == 1
    return cols.reshape(N * Ho * Wo, K * C)


def _deform_conv2d_from_nhwc_offset(x, offset_nhwc, weight, stride, padding,
                                    dilation, groups, deform_groups):
    N, C, H, W = x.shape
    Cout, Cin_g, kH, kW = weight.shape
    assert C % groups == 0 and Cout % groups == 0 and C % deform_groups == 0
    assert Cin_g * groups == C
    _, Ho, Wo, _ = offset_nhwc.shape
    K = kH * kW

    cols = deform_im2col_nhwc(x, offset_nhwc, kH, kW, stride, padding, dilation,
                              deform_groups)                 # (M, K*C), bf16

    # Fold groups into ONE lane-dense matmul with a block-diagonal weight
    # (single pallas_call, output width = Cout, no per-group loop / concat).
    if groups == 1:
        w_full = weight
    else:
        Cg = C // groups
        Cog = Cout // groups
        w_full = jnp.zeros((Cout, C, kH, kW), weight.dtype)
        for g in range(groups):
            w_full = w_full.at[g * Cog:(g + 1) * Cog,
                               g * Cg:(g + 1) * Cg].set(weight[g * Cog:(g + 1) * Cog])
    b = jnp.transpose(w_full, (2, 3, 1, 0)).reshape(K * C, Cout)   # rows = [k][c]
    out = pallas_matmul(cols, b)                              # no bias on hot path
    out = out.reshape(N, Ho, Wo, Cout)
    return jnp.transpose(out, (0, 3, 1, 2))                   # NCHW, matches PyTorch


def deform_conv2d_pallas(x, offset, weight, stride, padding, dilation, groups,
                         deform_groups):
    """DeformConv2dFunction.forward equivalent (offset given in NCHW)."""
    offset_nhwc = jnp.transpose(offset, (0, 2, 3, 1))
    return _deform_conv2d_from_nhwc_offset(x, offset_nhwc, weight, stride,
                                           padding, dilation, groups,
                                           deform_groups)


def deform_conv2d_pack_forward(x, weight, w_off, b_off, *, stride, padding,
                               dilation, groups, deform_groups):
    # self.conv_offset(x): ordinary Conv2d (kept NHWC to skip a transpose pass).
    offset_nhwc, _, _ = conv2d_nhwc_pallas(x, w_off, b_off, stride, padding,
                                           dilation)
    # deform_conv2d(x, offset, weight, ...)
    return _deform_conv2d_from_nhwc_offset(x, offset_nhwc, weight, stride,
                                           padding, dilation, groups,
                                           deform_groups)


if __name__ == "__main__":
    # Small shapes consistent with the module.
    N, Cin, H, W = 2, 4, 16, 16
    Cout, k = 8, 3
    stride = (1, 1)
    padding = (1, 1)
    dilation = (1, 1)
    groups = 1
    deform_groups = 1

    key = jax.random.PRNGKey(0)
    kx, kw = jax.random.split(key)
    x = jax.random.normal(kx, (N, Cin, H, W), dtype=jnp.float32)

    # DeformConv2d.reset_parameters: uniform(-stdv, stdv), stdv = 1/sqrt(n)
    stdv = 1.0 / math.sqrt(Cin * k * k)
    weight = jax.random.uniform(kw, (Cout, Cin // groups, k, k),
                                minval=-stdv, maxval=stdv, dtype=jnp.float32)

    # DeformConv2dPack.init_offset(): conv_offset weight & bias are zeros.
    C_off = deform_groups * 2 * k * k
    w_off = jnp.zeros((C_off, Cin, k, k), jnp.float32)
    b_off = jnp.zeros((C_off,), jnp.float32)

    fwd = jax.jit(functools.partial(
        deform_conv2d_pack_forward, stride=stride, padding=padding,
        dilation=dilation, groups=groups, deform_groups=deform_groups))

    out = jax.block_until_ready(fwd(x, weight, w_off, b_off))
    assert out.shape == (N, Cout, H, W), out.shape

    # Sanity check: with zero offsets, deformable conv == standard conv.
    # The kernel computes with bf16 tiles (f32 accumulation), so compare
    # against a reference built from bf16-rounded inputs/weights.
    x_r = x.astype(jnp.bfloat16).astype(jnp.float32)
    w_r = weight.astype(jnp.bfloat16).astype(jnp.float32)
    ref = jax.lax.conv_general_dilated(
        x_r, w_r, window_strides=stride, padding=[padding, padding],
        rhs_dilation=dilation, dimension_numbers=("NCHW", "OIHW", "NCHW"),
        feature_group_count=groups)
    assert jnp.allclose(out, ref, atol=2e-3, rtol=2e-3), \
        float(jnp.max(jnp.abs(out - ref)))

    print("KERNEL_OK")
</pallas_src>

<mosaic_0001>
module attributes {stable_mosaic.version = 11 : i64} {
  func.func @_mm_bias_kernel(%arg0: i32, %arg1: i32, %arg2: i32, %arg3: memref<512x128xbf16, #tpu.memory_space<vmem>>, %arg4: memref<128x128xbf16, #tpu.memory_space<vmem>>, %arg5: memref<1x128xf32, #tpu.memory_space<vmem>>, %arg6: memref<512x128xf32, #tpu.memory_space<vmem>>, %arg7: memref<512x128xf32, #tpu.memory_space<vmem>>) attributes {dimension_semantics = [#tpu.dimension_semantics<parallel>, #tpu.dimension_semantics<parallel>, #tpu.dimension_semantics<arbitrary>], iteration_bounds = array<i64: 1, 1, 1>, scalar_prefetch = 0 : i64, scratch_operands = 1 : i64, tpu.core_type = #tpu.core_type<tc>, window_params = [{transform_indices = @transform_0, window_bounds = array<i64: 512, 128>}, {transform_indices = @transform_1, window_bounds = array<i64: 128, 128>}, {transform_indices = @transform_2, window_bounds = array<i64: 1, 128>}, {transform_indices = @transform_3, window_bounds = array<i64: 512, 128>}]} {
    %c0_i32 = arith.constant 0 : i32
    %0 = arith.cmpi eq, %arg2, %c0_i32 : i32
    %1 = arith.extui %0 : i1 to i32
    %c0_i32_0 = arith.constant 0 : i32
    %2 = arith.cmpi ne, %1, %c0_i32_0 : i32
    scf.if %2 {
      %cst_10 = arith.constant 0.000000e+00 : f32
      %12 = vector.broadcast %cst_10 : f32 to vector<512x128xf32>
      %c0_11 = arith.constant 0 : index
      %c0_12 = arith.constant 0 : index
      %13 = vector.load %arg7[%c0_11, %c0_12] : memref<512x128xf32, #tpu.memory_space<vmem>>, vector<512x128xf32>
      tpu.vector_store %arg7[%c0_11, %c0_12], %12 {strides = array<i32>} : memref<512x128xf32, #tpu.memory_space<vmem>>, vector<512x128xf32>,
    } else {
    }
    %c0 = arith.constant 0 : index
    %c0_1 = arith.constant 0 : index
    %3 = vector.load %arg7[%c0, %c0_1] : memref<512x128xf32, #tpu.memory_space<vmem>>, vector<512x128xf32>
    %c0_2 = arith.constant 0 : index
    %c0_3 = arith.constant 0 : index
    %4 = vector.load %arg3[%c0_2, %c0_3] : memref<512x128xbf16, #tpu.memory_space<vmem>>, vector<512x128xbf16>
    %c0_4 = arith.constant 0 : index
    %c0_5 = arith.constant 0 : index
    %5 = vector.load %arg4[%c0_4, %c0_5] : memref<128x128xbf16, #tpu.memory_space<vmem>>, vector<128x128xbf16>
    %cst = arith.constant dense<0.000000e+00> : vector<512x128xf32>
    %6 = tpu.matmul %4, %5, %cst {dimension_numbers = #tpu.dot_dimension_numbers<[1], [0], [0], [1], [0, 0, 1, 1], [], []>} : vector<512x128xbf16>, vector<128x128xbf16>, vector<512x128xf32> -> vector<512x128xf32>
    %7 = arith.addf %3, %6 : vector<512x128xf32>
    %c0_6 = arith.constant 0 : index
    %c0_7 = arith.constant 0 : index
    %8 = vector.load %arg7[%c0_6, %c0_7] : memref<512x128xf32, #tpu.memory_space<vmem>>, vector<512x128xf32>
    tpu.vector_store %arg7[%c0_6, %c0_7], %7 {strides = array<i32>} : memref<512x128xf32, #tpu.memory_space<vmem>>, vector<512x128xf32>,
    %c0_i32_8 = arith.constant 0 : i32
    %9 = arith.cmpi eq, %arg2, %c0_i32_8 : i32
    %10 = arith.extui %9 : i1 to i32
    %c0_i32_9 = arith.constant 0 : i32
    %11 = arith.cmpi ne, %10, %c0_i32_9 : i32
    scf.if %11 {
      %c0_10 = arith.constant 0 : index
      %c0_11 = arith.constant 0 : index
      %12 = vector.load %arg7[%c0_10, %c0_11] : memref<512x128xf32, #tpu.memory_space<vmem>>, vector<512x128xf32>
      %c0_12 = arith.constant 0 : index
      %c0_13 = arith.constant 0 : index
      %13 = vector.load %arg5[%c0_12, %c0_13] : memref<1x128xf32, #tpu.memory_space<vmem>>, vector<1x128xf32>
      %14 = vector.broadcast %13 : vector<1x128xf32> to vector<512x128xf32>
      %15 = arith.addf %12, %14 : vector<512x128xf32>
      %c0_14 = arith.constant 0 : index
      %c0_15 = arith.constant 0 : index
      %16 = vector.load %arg6[%c0_14, %c0_15] : memref<512x128xf32, #tpu.memory_space<vmem>>, vector<512x128xf32>
      tpu.vector_store %arg6[%c0_14, %c0_15], %15 {strides = array<i32>} : memref<512x128xf32, #tpu.memory_space<vmem>>, vector<512x128xf32>,
    } else {
    }
    return
  }
  func.func @transform_0(%arg0: i32, %arg1: i32, %arg2: i32) -> (i32, i32) {
    %c0_i32 = arith.constant 0 : i32
    return %arg0, %arg2 : i32, i32
  }
  func.func @transform_1(%arg0: i32, %arg1: i32, %arg2: i32) -> (i32, i32) {
    %c0_i32 = arith.constant 0 : i32
    return %arg2, %arg1 : i32, i32
  }
  func.func @transform_2(%arg0: i32, %arg1: i32, %arg2: i32) -> (i32, i32) {
    %c0_i32 = arith.constant 0 : i32
    %c0_i32_0 = arith.constant 0 : i32
    return %c0_i32, %arg1 : i32, i32
  }
  func.func @transform_3(%arg0: i32, %arg1: i32, %arg2: i32) -> (i32, i32) {
    %c0_i32 = arith.constant 0 : i32
    return %arg0, %arg1 : i32, i32
  }
}

module attributes {stable_mosaic.version = 11 : i64} {
  func.func @_mm_kernel(%arg0: i32, %arg1: i32, %arg2: i32, %arg3: memref<512x128xbf16, #tpu.memory_space<vmem>>, %arg4: memref<128x128xbf16, #tpu.memory_space<vmem>>, %arg5: memref<512x128xf32, #tpu.memory_space<vmem>>, %arg6: memref<512x128xf32, #tpu.memory_space<vmem>>) attributes {dimension_semantics = [#tpu.dimension_semantics<parallel>, #tpu.dimension_semantics<parallel>, #tpu.dimension_semantics<arbitrary>], iteration_bounds = array<i64: 1, 1, 1>, scalar_prefetch = 0 : i64, scratch_operands = 1 : i64, tpu.core_type = #tpu.core_type<tc>, window_params = [{transform_indices = @transform_0, window_bounds = array<i64: 512, 128>}, {transform_indices = @transform_1, window_bounds = array<i64: 128, 128>}, {transform_indices = @transform_2, window_bounds = array<i64: 512, 128>}]} {
    %c0_i32 = arith.constant 0 : i32
    %0 = arith.cmpi eq, %arg2, %c0_i32 : i32
    %1 = arith.extui %0 : i1 to i32
    %c0_i32_0 = arith.constant 0 : i32
    %2 = arith.cmpi ne, %1, %c0_i32_0 : i32
    scf.if %2 {
      %cst_10 = arith.constant 0.000000e+00 : f32
      %12 = vector.broadcast %cst_10 : f32 to vector<512x128xf32>
      %c0_11 = arith.constant 0 : index
      %c0_12 = arith.constant 0 : index
      %13 = vector.load %arg6[%c0_11, %c0_12] : memref<512x128xf32, #tpu.memory_space<vmem>>, vector<512x128xf32>
      tpu.vector_store %arg6[%c0_11, %c0_12], %12 {strides = array<i32>} : memref<512x128xf32, #tpu.memory_space<vmem>>, vector<512x128xf32>,
    } else {
    }
    %c0 = arith.constant 0 : index
    %c0_1 = arith.constant 0 : index
    %3 = vector.load %arg6[%c0, %c0_1] : memref<512x128xf32, #tpu.memory_space<vmem>>, vector<512x128xf32>
    %c0_2 = arith.constant 0 : index
    %c0_3 = arith.constant 0 : index
    %4 = vector.load %arg3[%c0_2, %c0_3] : memref<512x128xbf16, #tpu.memory_space<vmem>>, vector<512x128xbf16>
    %c0_4 = arith.constant 0 : index
    %c0_5 = arith.constant 0 : index
    %5 = vector.load %arg4[%c0_4, %c0_5] : memref<128x128xbf16, #tpu.memory_space<vmem>>, vector<128x128xbf16>
    %cst = arith.constant dense<0.000000e+00> : vector<512x128xf32>
    %6 = tpu.matmul %4, %5, %cst {dimension_numbers = #tpu.dot_dimension_numbers<[1], [0], [0], [1], [0, 0, 1, 1], [], []>} : vector<512x128xbf16>, vector<128x128xbf16>, vector<512x128xf32> -> vector<512x128xf32>
    %7 = arith.addf %3, %6 : vector<512x128xf32>
    %c0_6 = arith.constant 0 : index
    %c0_7 = arith.constant 0 : index
    %8 = vector.load %arg6[%c0_6, %c0_7] : memref<512x128xf32, #tpu.memory_space<vmem>>, vector<512x128xf32>
    tpu.vector_store %arg6[%c0_6, %c0_7], %7 {strides = array<i32>} : memref<512x128xf32, #tpu.memory_space<vmem>>, vector<512x128xf32>,
    %c0_i32_8 = arith.constant 0 : i32
    %9 = arith.cmpi eq, %arg2, %c0_i32_8 : i32
    %10 = arith.extui %9 : i1 to i32
    %c0_i32_9 = arith.constant 0 : i32
    %11 = arith.cmpi ne, %10, %c0_i32_9 : i32
    scf.if %11 {
      %c0_10 = arith.constant 0 : index
      %c0_11 = arith.constant 0 : index
      %12 = vector.load %arg6[%c0_10, %c0_11] : memref<512x128xf32, #tpu.memory_space<vmem>>, vector<512x128xf32>
      %c0_12 = arith.constant 0 : index
      %c0_13 = arith.constant 0 : index
      %13 = vector.load %arg5[%c0_12, %c0_13] : memref<512x128xf32, #tpu.memory_space<vmem>>, vector<512x128xf32>
      tpu.vector_store %arg5[%c0_12, %c0_13], %12 {strides = array<i32>} : memref<512x128xf32, #tpu.memory_space<vmem>>, vector<512x128xf32>,
    } else {
    }
    return
  }
  func.func @transform_0(%arg0: i32, %arg1: i32, %arg2: i32) -> (i32, i32) {
    %c0_i32 = arith.constant 0 : i32
    return %arg0, %arg2 : i32, i32
  }
  func.func @transform_1(%arg0: i32, %arg1: i32, %arg2: i32) -> (i32, i32) {
    %c0_i32 = arith.constant 0 : i32
    return %arg2, %arg1 : i32, i32
  }
  func.func @transform_2(%arg0: i32, %arg1: i32, %arg2: i32) -> (i32, i32) {
    %c0_i32 = arith.constant 0 : i32
    return %arg0, %arg1 : i32, i32
  }
}

</mosaic_0001>

<llo_original>
// kernel: deform_conv2d_pack_forward.2
$region0: #{deform_conv2d_pack_forward.2}
  #allocation0 [shape = 'u32[]', space=smem, size = 0x4, offset = 0x4, fixed_abs, tag = 'smem constant byte address 0x4 - core index']
  #allocation1 [shape = 'u32[72,128]{1,0:T(1,128)}', space=vmem, size = 0x9000, scoped, tag = 'internal scratch']
  #allocation2 [shape = 'f32[512,128]{1,0:T(8,128)}', space=vmem, size = 0x40000, scoped, tag = 'scratch operand']
  %s0 = inlined_call_operand.vmem [shape: bf16[512,128], index: 0, kind: input, shape index: {}]
  %s1 = inlined_call_operand.vmem [shape: bf16[128,128], index: 1, kind: input, shape index: {}]
  %s2 = inlined_call_operand.vmem [shape: f32[1,128], index: 2, kind: input, shape index: {}]
  %s3 = inlined_call_operand.vmem [shape: f32[512,128], index: 3, kind: output, shape index: {}]
  %s4 = sld [smem:[#allocation0]]
  $region30: #{deform_conv2d_pack_forward.2} parent=0
    _
  %s6 = ssub.s32 1, %s4
  %s7 = scalar_select 0, %s6, %s4
  // Predicated region
  $region2: #{deform_conv2d_pack_forward.2} parent=0 // pred_check
    _
  $region3: #{deform_conv2d_pack_forward.2} parent=0 // pred_check_branch
    %9 = sbr.rel (0) target = $region5
  $region4: #{deform_conv2d_pack_forward.2} parent=0 // pred_region
    _
  $region5: #{deform_conv2d_pack_forward.2} parent=0 // pred_fallthru
    _
  // Predicated region
  $region6: #{deform_conv2d_pack_forward.2} parent=0 // pred_check
    _
  $region7: #{deform_conv2d_pack_forward.2} parent=0 // pred_check_branch
    %11 = sbr.rel (0) target = $region9
  $region8: #{deform_conv2d_pack_forward.2} parent=0 // pred_region
    _
  $region9: #{deform_conv2d_pack_forward.2} parent=0 // pred_fallthru
    _
  // Predicated region
  $region10: #{deform_conv2d_pack_forward.2} parent=0 // pred_check
    _
  $region11: #{deform_conv2d_pack_forward.2} parent=0 // pred_check_branch
    %13 = sbr.rel (0) target = $region13
  $region12: #{deform_conv2d_pack_forward.2} parent=0 // pred_region
    _
  $region13: #{deform_conv2d_pack_forward.2} parent=0 // pred_fallthru
    _
  %p14 = scmp.eq.s32.totalorder 0, 0
  // Predicated region
  $region14: #{deform_conv2d_pack_forward.2} parent=0 // pred_check
    %p15 = pneg %p14
  $region15: #{deform_conv2d_pack_forward.2} parent=0 // pred_check_branch
    %17 = sbr.rel (%p15) target = $region17
  $region16: #{deform_conv2d_pack_forward.2} parent=0 // pred_region
    %18 = vst [vmem:[#allocation2] sm:$0xff] 0.0
    %19 = vst [vmem:[#allocation2 + $0x8] sm:$0xff] 0.0
    %20 = vst [vmem:[#allocation2 + $0x10] sm:$0xff] 0.0
    %21 = vst [vmem:[#allocation2 + $0x18] sm:$0xff] 0.0
    %22 = vst [vmem:[#allocation2 + $0x20] sm:$0xff] 0.0
    %23 = vst [vmem:[#allocation2 + $0x28] sm:$0xff] 0.0
    %24 = vst [vmem:[#allocation2 + $0x30] sm:$0xff] 0.0
    %25 = vst [vmem:[#allocation2 + $0x38] sm:$0xff] 0.0
    %26 = vst [vmem:[#allocation2 + $0x40] sm:$0xff] 0.0
    %27 = vst [vmem:[#allocation2 + $0x48] sm:$0xff] 0.0
    %28 = vst [vmem:[#allocation2 + $0x50] sm:$0xff] 0.0
    %29 = vst [vmem:[#allocation2 + $0x58] sm:$0xff] 0.0
    %30 = vst [vmem:[#allocation2 + $0x60] sm:$0xff] 0.0
    %31 = vst [vmem:[#allocation2 + $0x68] sm:$0xff] 0.0
    %32 = vst [vmem:[#allocation2 + $0x70] sm:$0xff] 0.0
    %33 = vst [vmem:[#allocation2 + $0x78] sm:$0xff] 0.0
    %34 = vst [vmem:[#allocation2 + $0x80] sm:$0xff] 0.0
    %35 = vst [vmem:[#allocation2 + $0x88] sm:$0xff] 0.0
    %36 = vst [vmem:[#allocation2 + $0x90] sm:$0xff] 0.0
    %37 = vst [vmem:[#allocation2 + $0x98] sm:$0xff] 0.0
    %38 = vst [vmem:[#allocation2 + $0xa0] sm:$0xff] 0.0
    %39 = vst [vmem:[#allocation2 + $0xa8] sm:$0xff] 0.0
    %40 = vst [vmem:[#allocation2 + $0xb0] sm:$0xff] 0.0
    %41 = vst [vmem:[#allocation2 + $0xb8] sm:$0xff] 0.0
    %42 = vst [vmem:[#allocation2 + $0xc0] sm:$0xff] 0.0
    %43 = vst [vmem:[#allocation2 + $0xc8] sm:$0xff] 0.0
    %44 = vst [vmem:[#allocation2 + $0xd0] sm:$0xff] 0.0
    %45 = vst [vmem:[#allocation2 + $0xd8] sm:$0xff] 0.0
    %46 = vst [vmem:[#allocation2 + $0xe0] sm:$0xff] 0.0
    %47 = vst [vmem:[#allocation2 + $0xe8] sm:$0xff] 0.0
    %48 = vst [vmem:[#allocation2 + $0xf0] sm:$0xff] 0.0
    %49 = vst [vmem:[#allocation2 + $0xf8] sm:$0xff] 0.0
    %50 = vst [vmem:[#allocation2 + $0x100] sm:$0xff] 0.0
    %51 = vst [vmem:[#allocation2 + $0x108] sm:$0xff] 0.0
    %52 = vst [vmem:[#allocation2 + $0x110] sm:$0xff] 0.0
    %53 = vst [vmem:[#allocation2 + $0x118] sm:$0xff] 0.0
    %54 = vst [vmem:[#allocation2 + $0x120] sm:$0xff] 0.0
    %55 = vst [vmem:[#allocation2 + $0x128] sm:$0xff] 0.0
    %56 = vst [vmem:[#allocation2 + $0x130] sm:$0xff] 0.0
    %57 = vst [vmem:[#allocation2 + $0x138] sm:$0xff] 0.0
    %58 = vst [vmem:[#allocation2 + $0x140] sm:$0xff] 0.0
    %59 = vst [vmem:[#allocation2 + $0x148] sm:$0xff] 0.0
    %60 = vst [vmem:[#allocation2 + $0x150] sm:$0xff] 0.0
    %61 = vst [vmem:[#allocation2 + $0x158] sm:$0xff] 0.0
    %62 = vst [vmem:[#allocation2 + $0x160] sm:$0xff] 0.0
    %63 = vst [vmem:[#allocation2 + $0x168] sm:$0xff] 0.0
    %64 = vst [vmem:[#allocation2 + $0x170] sm:$0xff] 0.0
    %65 = vst [vmem:[#allocation2 + $0x178] sm:$0xff] 0.0
    %66 = vst [vmem:[#allocation2 + $0x180] sm:$0xff] 0.0
    %67 = vst [vmem:[#allocation2 + $0x188] sm:$0xff] 0.0
    %68 = vst [vmem:[#allocation2 + $0x190] sm:$0xff] 0.0
    %69 = vst [vmem:[#allocation2 + $0x198] sm:$0xff] 0.0
    %70 = vst [vmem:[#allocation2 + $0x1a0] sm:$0xff] 0.0
    %71 = vst [vmem:[#allocation2 + $0x1a8] sm:$0xff] 0.0
    %72 = vst [vmem:[#allocation2 + $0x1b0] sm:$0xff] 0.0
    %73 = vst [vmem:[#allocation2 + $0x1b8] sm:$0xff] 0.0
    %74 = vst [vmem:[#allocation2 + $0x1c0] sm:$0xff] 0.0
    %75 = vst [vmem:[#allocation2 + $0x1c8] sm:$0xff] 0.0
    %76 = vst [vmem:[#allocation2 + $0x1d0] sm:$0xff] 0.0
    %77 = vst [vmem:[#allocation2 + $0x1d8] sm:$0xff] 0.0
    %78 = vst [vmem:[#allocation2 + $0x1e0] sm:$0xff] 0.0
    %79 = vst [vmem:[#allocation2 + $0x1e8] sm:$0xff] 0.0
    %80 = vst [vmem:[#allocation2 + $0x1f0] sm:$0xff] 0.0
    %81 = vst [vmem:[#allocation2 + $0x1f8] sm:$0xff] 0.0
  $region17: #{deform_conv2d_pack_forward.2} parent=0 // pred_fallthru
    _
  %v82 = vld [vmem:[#allocation2] sm:$0xff]
  %v83 = vld [vmem:[#allocation2 + $0x8] sm:$0xff]
  %v84 = vld [vmem:[#allocation2 + $0x10] sm:$0xff]
  %v85 = vld [vmem:[#allocation2 + $0x18] sm:$0xff]
  %v86 = vld [vmem:[#allocation2 + $0x20] sm:$0xff]
  %v87 = vld [vmem:[#allocation2 + $0x28] sm:$0xff]
  %v88 = vld [vmem:[#allocation2 + $0x30] sm:$0xff]
  %v89 = vld [vmem:[#allocation2 + $0x38] sm:$0xff]
  %v90 = vld [vmem:[#allocation2 + $0x40] sm:$0xff]
  %v91 = vld [vmem:[#allocation2 + $0x48] sm:$0xff]
  %v92 = vld [vmem:[#allocation2 + $0x50] sm:$0xff]
  %v93 = vld [vmem:[#allocation2 + $0x58] sm:$0xff]
  %v94 = vld [vmem:[#allocation2 + $0x60] sm:$0xff]
  %v95 = vld [vmem:[#allocation2 + $0x68] sm:$0xff]
  %v96 = vld [vmem:[#allocation2 + $0x70] sm:$0xff]
  %v97 = vld [vmem:[#allocation2 + $0x78] sm:$0xff]
  %v98 = vld [vmem:[#allocation2 + $0x80] sm:$0xff]
  %v99 = vld [vmem:[#allocation2 + $0x88] sm:$0xff]
  %v100 = vld [vmem:[#allocation2 + $0x90] sm:$0xff]
  %v101 = vld [vmem:[#allocation2 + $0x98] sm:$0xff]
  %v102 = vld [vmem:[#allocation2 + $0xa0] sm:$0xff]
  %v103 = vld [vmem:[#allocation2 + $0xa8] sm:$0xff]
  %v104 = vld [vmem:[#allocation2 + $0xb0] sm:$0xff]
  %v105 = vld [vmem:[#allocation2 + $0xb8] sm:$0xff]
  %v106 = vld [vmem:[#allocation2 + $0xc0] sm:$0xff]
  %v107 = vld [vmem:[#allocation2 + $0xc8] sm:$0xff]
  %v108 = vld [vmem:[#allocation2 + $0xd0] sm:$0xff]
  %v109 = vld [vmem:[#allocation2 + $0xd8] sm:$0xff]
  %v110 = vld [vmem:[#allocation2 + $0xe0] sm:$0xff]
  %v111 = vld [vmem:[#allocation2 + $0xe8] sm:$0xff]
  %v112 = vld [vmem:[#allocation2 + $0xf0] sm:$0xff]
  %v113 = vld [vmem:[#allocation2 + $0xf8] sm:$0xff]
  %v114 = vld [vmem:[#allocation2 + $0x100] sm:$0xff]
  %v115 = vld [vmem:[#allocation2 + $0x108] sm:$0xff]
  %v116 = vld [vmem:[#allocation2 + $0x110] sm:$0xff]
  %v117 = vld [vmem:[#allocation2 + $0x118] sm:$0xff]
  %v118 = vld [vmem:[#allocation2 + $0x120] sm:$0xff]
  %v119 = vld [vmem:[#allocation2 + $0x128] sm:$0xff]
  %v120 = vld [vmem:[#allocation2 + $0x130] sm:$0xff]
  %v121 = vld [vmem:[#allocation2 + $0x138] sm:$0xff]
  %v122 = vld [vmem:[#allocation2 + $0x140] sm:$0xff]
  %v123 = vld [vmem:[#allocation2 + $0x148] sm:$0xff]
  %v124 = vld [vmem:[#allocation2 + $0x150] sm:$0xff]
  %v125 = vld [vmem:[#allocation2 + $0x158] sm:$0xff]
  %v126 = vld [vmem:[#allocation2 + $0x160] sm:$0xff]
  %v127 = vld [vmem:[#allocation2 + $0x168] sm:$0xff]
  %v128 = vld [vmem:[#allocation2 + $0x170] sm:$0xff]
  %v129 = vld [vmem:[#allocation2 + $0x178] sm:$0xff]
  %v130 = vld [vmem:[#allocation2 + $0x180] sm:$0xff]
  %v131 = vld [vmem:[#allocation2 + $0x188] sm:$0xff]
  %v132 = vld [vmem:[#allocation2 + $0x190] sm:$0xff]
  %v133 = vld [vmem:[#allocation2 + $0x198] sm:$0xff]
  %v134 = vld [vmem:[#allocation2 + $0x1a0] sm:$0xff]
  %v135 = vld [vmem:[#allocation2 + $0x1a8] sm:$0xff]
  %v136 = vld [vmem:[#allocation2 + $0x1b0] sm:$0xff]
  %v137 = vld [vmem:[#allocation2 + $0x1b8] sm:$0xff]
  %v138 = vld [vmem:[#allocation2 + $0x1c0] sm:$0xff]
  %v139 = vld [vmem:[#allocation2 + $0x1c8] sm:$0xff]
  %v140 = vld [vmem:[#allocation2 + $0x1d0] sm:$0xff]
  %v141 = vld [vmem:[#allocation2 + $0x1d8] sm:$0xff]
  %v142 = vld [vmem:[#allocation2 + $0x1e0] sm:$0xff]
  %v143 = vld [vmem:[#allocation2 + $0x1e8] sm:$0xff]
  %v144 = vld [vmem:[#allocation2 + $0x1f0] sm:$0xff]
  %v145 = vld [vmem:[#allocation2 + $0x1f8] sm:$0xff]
  %v146 = vld [vmem:[%s0] sm:$0xf]
  %v147 = vld [vmem:[%s0 + $0x4] sm:$0xf]
  %v148 = vld [vmem:[%s0 + $0x8] sm:$0xf]
  %v149 = vld [vmem:[%s0 + $0xc] sm:$0xf]
  %v150 = vld [vmem:[%s0 + $0x10] sm:$0xf]
  %v151 = vld [vmem:[%s0 + $0x14] sm:$0xf]
  %v152 = vld [vmem:[%s0 + $0x18] sm:$0xf]
  %v153 = vld [vmem:[%s0 + $0x1c] sm:$0xf]
  %v154 = vld [vmem:[%s0 + $0x20] sm:$0xf]
  %v155 = vld [vmem:[%s0 + $0x24] sm:$0xf]
  %v156 = vld [vmem:[%s0 + $0x28] sm:$0xf]
  %v157 = vld [vmem:[%s0 + $0x2c] sm:$0xf]
  %v158 = vld [vmem:[%s0 + $0x30] sm:$0xf]
  %v159 = vld [vmem:[%s0 + $0x34] sm:$0xf]
  %v160 = vld [vmem:[%s0 + $0x38] sm:$0xf]
  %v161 = vld [vmem:[%s0 + $0x3c] sm:$0xf]
  %v162 = vld [vmem:[%s0 + $0x40] sm:$0xf]
  %v163 = vld [vmem:[%s0 + $0x44] sm:$0xf]
  %v164 = vld [vmem:[%s0 + $0x48] sm:$0xf]
  %v165 = vld [vmem:[%s0 + $0x4c] sm:$0xf]
  %v166 = vld [vmem:[%s0 + $0x50] sm:$0xf]
  %v167 = vld [vmem:[%s0 + $0x54] sm:$0xf]
  %v168 = vld [vmem:[%s0 + $0x58] sm:$0xf]
  %v169 = vld [vmem:[%s0 + $0x5c] sm:$0xf]
  %v170 = vld [vmem:[%s0 + $0x60] sm:$0xf]
  %v171 = vld [vmem:[%s0 + $0x64] sm:$0xf]
  %v172 = vld [vmem:[%s0 + $0x68] sm:$0xf]
  %v173 = vld [vmem:[%s0 + $0x6c] sm:$0xf]
  %v174 = vld [vmem:[%s0 + $0x70] sm:$0xf]
  %v175 = vld [vmem:[%s0 + $0x74] sm:$0xf]
  %v176 = vld [vmem:[%s0 + $0x78] sm:$0xf]
  %v177 = vld [vmem:[%s0 + $0x7c] sm:$0xf]
  %v178 = vld [vmem:[%s0 + $0x80] sm:$0xf]
  %v179 = vld [vmem:[%s0 + $0x84] sm:$0xf]
  %v180 = vld [vmem:[%s0 + $0x88] sm:$0xf]
  %v181 = vld [vmem:[%s0 + $0x8c] sm:$0xf]
  %v182 = vld [vmem:[%s0 + $0x90] sm:$0xf]
  %v183 = vld [vmem:[%s0 + $0x94] sm:$0xf]
  %v184 = vld [vmem:[%s0 + $0x98] sm:$0xf]
  %v185 = vld [vmem:[%s0 + $0x9c] sm:$0xf]
  %v186 = vld [vmem:[%s0 + $0xa0] sm:$0xf]
  %v187 = vld [vmem:[%s0 + $0xa4] sm:$0xf]
  %v188 = vld [vmem:[%s0 + $0xa8] sm:$0xf]
  %v189 = vld [vmem:[%s0 + $0xac] sm:$0xf]
  %v190 = vld [vmem:[%s0 + $0xb0] sm:$0xf]
  %v191 = vld [vmem:[%s0 + $0xb4] sm:$0xf]
  %v192 = vld [vmem:[%s0 + $0xb8] sm:$0xf]
  %v193 = vld [vmem:[%s0 + $0xbc] sm:$0xf]
  %v194 = vld [vmem:[%s0 + $0xc0] sm:$0xf]
  %v195 = vld [vmem:[%s0 + $0xc4] sm:$0xf]
  %v196 = vld [vmem:[%s0 + $0xc8] sm:$0xf]
  %v197 = vld [vmem:[%s0 + $0xcc] sm:$0xf]
  %v198 = vld [vmem:[%s0 + $0xd0] sm:$0xf]
  %v199 = vld [vmem:[%s0 + $0xd4] sm:$0xf]
  %v200 = vld [vmem:[%s0 + $0xd8] sm:$0xf]
  %v201 = vld [vmem:[%s0 + $0xdc] sm:$0xf]
  %v202 = vld [vmem:[%s0 + $0xe0] sm:$0xf]
  %v203 = vld [vmem:[%s0 + $0xe4] sm:$0xf]
  %v204 = vld [vmem:[%s0 + $0xe8] sm:$0xf]
  %v205 = vld [vmem:[%s0 + $0xec] sm:$0xf]
  %v206 = vld [vmem:[%s0 + $0xf0] sm:$0xf]
  %v207 = vld [vmem:[%s0 + $0xf4] sm:$0xf]
  %v208 = vld [vmem:[%s0 + $0xf8] sm:$0xf]
  %v209 = vld [vmem:[%s0 + $0xfc] sm:$0xf]
  %v210 = vld [vmem:[%s1] sm:$0xf]
  %v211 = vld [vmem:[%s1 + $0x4] sm:$0xf]
  %v212 = vld [vmem:[%s1 + $0x8] sm:$0xf]
  %v213 = vld [vmem:[%s1 + $0xc] sm:$0xf]
  %v214 = vld [vmem:[%s1 + $0x10] sm:$0xf]
  %v215 = vld [vmem:[%s1 + $0x14] sm:$0xf]
  %v216 = vld [vmem:[%s1 + $0x18] sm:$0xf]
  %v217 = vld [vmem:[%s1 + $0x1c] sm:$0xf]
  %v218 = vld [vmem:[%s1 + $0x20] sm:$0xf]
  %v219 = vld [vmem:[%s1 + $0x24] sm:$0xf]
  %v220 = vld [vmem:[%s1 + $0x28] sm:$0xf]
  %v221 = vld [vmem:[%s1 + $0x2c] sm:$0xf]
  %v222 = vld [vmem:[%s1 + $0x30] sm:$0xf]
  %v223 = vld [vmem:[%s1 + $0x34] sm:$0xf]
  %v224 = vld [vmem:[%s1 + $0x38] sm:$0xf]
  %v225 = vld [vmem:[%s1 + $0x3c] sm:$0xf]
  %v290 = vunpack.c.l.b16 %v146
  %v291 = vunpack.c.l.b16 %v147
  %v292 = vunpack.c.l.b16 %v148
  %v293 = vunpack.c.l.b16 %v149
  %v294 = vunpack.c.l.b16 %v150
  %v295 = vunpack.c.l.b16 %v151
  %v296 = vunpack.c.l.b16 %v152
  %v297 = vunpack.c.l.b16 %v153
  %v298 = vunpack.c.l.b16 %v154
  %v299 = vunpack.c.l.b16 %v155
  %v300 = vunpack.c.l.b16 %v156
  %v301 = vunpack.c.l.b16 %v157
  %v302 = vunpack.c.l.b16 %v158
  %v303 = vunpack.c.l.b16 %v159
  %v304 = vunpack.c.l.b16 %v160
  %v305 = vunpack.c.l.b16 %v161
  %v306 = vunpack.c.l.b16 %v162
  %v307 = vunpack.c.l.b16 %v163
  %v308 = vunpack.c.l.b16 %v164
  %v309 = vunpack.c.l.b16 %v165
  %v310 = vunpack.c.l.b16 %v166
  %v311 = vunpack.c.l.b16 %v167
  %v312 = vunpack.c.l.b16 %v168
  %v313 = vunpack.c.l.b16 %v169
  %v314 = vunpack.c.l.b16 %v170
  %v315 = vunpack.c.l.b16 %v171
  %v316 = vunpack.c.l.b16 %v172
  %v317 = vunpack.c.l.b16 %v173
  %v318 = vunpack.c.l.b16 %v174
  %v319 = vunpack.c.l.b16 %v175
  %v320 = vunpack.c.l.b16 %v176
  %v321 = vunpack.c.l.b16 %v177
  %v322 = vunpack.c.l.b16 %v178
  %v323 = vunpack.c.l.b16 %v179
  %v324 = vunpack.c.l.b16 %v180
  %v325 = vunpack.c.l.b16 %v181
  %v326 = vunpack.c.l.b16 %v182
  %v327 = vunpack.c.l.b16 %v183
  %v328 = vunpack.c.l.b16 %v184
  %v329 = vunpack.c.l.b16 %v185
  %v330 = vunpack.c.l.b16 %v186
  %v331 = vunpack.c.l.b16 %v187
  %v332 = vunpack.c.l.b16 %v188
  %v333 = vunpack.c.l.b16 %v189
  %v334 = vunpack.c.l.b16 %v190
  %v335 = vunpack.c.l.b16 %v191
  %v336 = vunpack.c.l.b16 %v192
  %v337 = vunpack.c.l.b16 %v193
  %v338 = vunpack.c.l.b16 %v194
  %v339 = vunpack.c.l.b16 %v195
  %v340 = vunpack.c.l.b16 %v196
  %v341 = vunpack.c.l.b16 %v197
  %v342 = vunpack.c.l.b16 %v198
  %v343 = vunpack.c.l.b16 %v199
  %v344 = vunpack.c.l.b16 %v200
  %v345 = vunpack.c.l.b16 %v201
  %v346 = vunpack.c.l.b16 %v202
  %v347 = vunpack.c.l.b16 %v203
  %v348 = vunpack.c.l.b16 %v204
  %v349 = vunpack.c.l.b16 %v205
  %v350 = vunpack.c.l.b16 %v206
  %v351 = vunpack.c.l.b16 %v207
  %v352 = vunpack.c.l.b16 %v208
  %v353 = vunpack.c.l.b16 %v209
  %v354 = vpack.c.b16 %v291, %v290
  %v355 = vpack.c.b16 %v293, %v292
  %v356 = vpack.c.b16 %v295, %v294
  %v357 = vpack.c.b16 %v297, %v296
  %v358 = vpack.c.b16 %v299, %v298
  %v359 = vpack.c.b16 %v301, %v300
  %v360 = vpack.c.b16 %v303, %v302
  %v361 = vpack.c.b16 %v305, %v304
  %v362 = vpack.c.b16 %v307, %v306
  %v363 = vpack.c.b16 %v309, %v308
  %v364 = vpack.c.b16 %v311, %v310
  %v365 = vpack.c.b16 %v313, %v312
  %v366 = vpack.c.b16 %v315, %v314
  %v367 = vpack.c.b16 %v317, %v316
  %v368 = vpack.c.b16 %v319, %v318
  %v369 = vpack.c.b16 %v321, %v320
  %v370 = vpack.c.b16 %v323, %v322
  %v371 = vpack.c.b16 %v325, %v324
  %v372 = vpack.c.b16 %v327, %v326
  %v373 = vpack.c.b16 %v329, %v328
  %v374 = vpack.c.b16 %v331, %v330
  %v375 = vpack.c.b16 %v333, %v332
  %v376 = vpack.c.b16 %v335, %v334
  %v377 = vpack.c.b16 %v337, %v336
  %v378 = vpack.c.b16 %v339, %v338
  %v379 = vpack.c.b16 %v341, %v340
  %v380 = vpack.c.b16 %v343, %v342
  %v381 = vpack.c.b16 %v345, %v344
  %v382 = vpack.c.b16 %v347, %v346
  %v383 = vpack.c.b16 %v349, %v348
  %v384 = vpack.c.b16 %v351, %v350
  %v385 = vpack.c.b16 %v353, %v352
  %v434 = vunpack.c.l.b16 %v210
  %v435 = vunpack.c.l.b16 %v211
  %v436 = vunpack.c.l.b16 %v212
  %v437 = vunpack.c.l.b16 %v213
  %v438 = vunpack.c.l.b16 %v214
  %v439 = vunpack.c.l.b16 %v215
  %v440 = vunpack.c.l.b16 %v216
  %v441 = vunpack.c.l.b16 %v217
  %v442 = vunpack.c.l.b16 %v218
  %v443 = vunpack.c.l.b16 %v219
  %v444 = vunpack.c.l.b16 %v220
  %v445 = vunpack.c.l.b16 %v221
  %v446 = vunpack.c.l.b16 %v222
  %v447 = vunpack.c.l.b16 %v223
  %v448 = vunpack.c.l.b16 %v224
  %v449 = vunpack.c.l.b16 %v225
  %v450 = vpack.c.b16 %v435, %v434
  %v451 = vpack.c.b16 %v437, %v436
  %v452 = vpack.c.b16 %v439, %v438
  %v453 = vpack.c.b16 %v441, %v440
  %v454 = vpack.c.b16 %v443, %v442
  %v455 = vpack.c.b16 %v445, %v444
  %v456 = vpack.c.b16 %v447, %v446
  %v457 = vpack.c.b16 %v449, %v448
  %466 = vmatpush.bf16.msra.mxu0 %v457
  %467 = vmatpush.bf16.msra.mxu0 %v456
  %468 = vmatpush.bf16.msra.mxu0 %v455
  %469 = vmatpush.bf16.msra.mxu0 %v454
  %470 = vmatpush.bf16.msra.mxu0 %v453
  %471 = vmatpush.bf16.msra.mxu0 %v452
  %472 = vmatpush.bf16.msra.mxu0 %v451
  %473 = vmatpush.bf16.msra.mxu0 %v450
  %474 = vmatmul.bf16.gmra.mxu0 %v354
  %v475 = vpop.f32.mrf.mxu0
  %v476 = vadd.f32 0.0, %v475
  %v477 = vpop.f32.mrf.mxu0
  %v478 = vadd.f32 0.0, %v477
  %479 = vmatmul.bf16.gmra.mxu0 %v355
  %v480 = vpop.f32.mrf.mxu0
  %v481 = vadd.f32 0.0, %v480
  %v482 = vpop.f32.mrf.mxu0
  %v483 = vadd.f32 0.0, %v482
  %484 = vmatmul.bf16.gmra.mxu0 %v356
  %v485 = vpop.f32.mrf.mxu0
  %v486 = vadd.f32 0.0, %v485
  %v487 = vpop.f32.mrf.mxu0
  %v488 = vadd.f32 0.0, %v487
  %489 = vmatmul.bf16.gmra.mxu0 %v357
  %v490 = vpop.f32.mrf.mxu0
  %v491 = vadd.f32 0.0, %v490
  %v492 = vpop.f32.mrf.mxu0
  %v493 = vadd.f32 0.0, %v492
  %494 = vmatmul.bf16.gmra.mxu0 %v358
  %v495 = vpop.f32.mrf.mxu0
  %v496 = vadd.f32 0.0, %v495
  %v497 = vpop.f32.mrf.mxu0
  %v498 = vadd.f32 0.0, %v497
  %499 = vmatmul.bf16.gmra.mxu0 %v359
  %v500 = vpop.f32.mrf.mxu0
  %v501 = vadd.f32 0.0, %v500
  %v502 = vpop.f32.mrf.mxu0
  %v503 = vadd.f32 0.0, %v502
  %504 = vmatmul.bf16.gmra.mxu0 %v360
  %v505 = vpop.f32.mrf.mxu0
  %v506 = vadd.f32 0.0, %v505
  %v507 = vpop.f32.mrf.mxu0
  %v508 = vadd.f32 0.0, %v507
  %509 = vmatmul.bf16.gmra.mxu0 %v361
  %v510 = vpop.f32.mrf.mxu0
  %v511 = vadd.f32 0.0, %v510
  %v512 = vpop.f32.mrf.mxu0
  %v513 = vadd.f32 0.0, %v512
  %514 = vmatmul.bf16.gmra.mxu0 %v362
  %v515 = vpop.f32.mrf.mxu0
  %v516 = vadd.f32 0.0, %v515
  %v517 = vpop.f32.mrf.mxu0
  %v518 = vadd.f32 0.0, %v517
  %519 = vmatmul.bf16.gmra.mxu0 %v363
  %v520 = vpop.f32.mrf.mxu0
  %v521 = vadd.f32 0.0, %v520
  %v522 = vpop.f32.mrf.mxu0
  %v523 = vadd.f32 0.0, %v522
  %524 = vmatmul.bf16.gmra.mxu0 %v364
  %v525 = vpop.f32.mrf.mxu0
  %v526 = vadd.f32 0.0, %v525
  %v527 = vpop.f32.mrf.mxu0
  %v528 = vadd.f32 0.0, %v527
  %529 = vmatmul.bf16.gmra.mxu0 %v365
  %v530 = vpop.f32.mrf.mxu0
  %v531 = vadd.f32 0.0, %v530
  %v532 = vpop.f32.mrf.mxu0
  %v533 = vadd.f32 0.0, %v532
  %534 = vmatmul.bf16.gmra.mxu0 %v366
  %v535 = vpop.f32.mrf.mxu0
  %v536 = vadd.f32 0.0, %v535
  %v537 = vpop.f32.mrf.mxu0
  %v538 = vadd.f32 0.0, %v537
  %539 = vmatmul.bf16.gmra.mxu0 %v367
  %v540 = vpop.f32.mrf.mxu0
  %v541 = vadd.f32 0.0, %v540
  %v542 = vpop.f32.mrf.mxu0
  %v543 = vadd.f32 0.0, %v542
  %544 = vmatmul.bf16.gmra.mxu0 %v368
  %v545 = vpop.f32.mrf.mxu0
  %v546 = vadd.f32 0.0, %v545
  %v547 = vpop.f32.mrf.mxu0
  %v548 = vadd.f32 0.0, %v547
  %549 = vmatmul.bf16.gmra.mxu0 %v369
  %v550 = vpop.f32.mrf.mxu0
  %v551 = vadd.f32 0.0, %v550
  %v552 = vpop.f32.mrf.mxu0
  %v553 = vadd.f32 0.0, %v552
  %554 = vmatmul.bf16.gmra.mxu0 %v370
  %v555 = vpop.f32.mrf.mxu0
  %v556 = vadd.f32 0.0, %v555
  %v557 = vpop.f32.mrf.mxu0
  %v558 = vadd.f32 0.0, %v557
  %559 = vmatmul.bf16.gmra.mxu0 %v371
  %v560 = vpop.f32.mrf.mxu0
  %v561 = vadd.f32 0.0, %v560
  %v562 = vpop.f32.mrf.mxu0
  %v563 = vadd.f32 0.0, %v562
  %564 = vmatmul.bf16.gmra.mxu0 %v372
  %v565 = vpop.f32.mrf.mxu0
  %v566 = vadd.f32 0.0, %v565
  %v567 = vpop.f32.mrf.mxu0
  %v568 = vadd.f32 0.0, %v567
  %569 = vmatmul.bf16.gmra.mxu0 %v373
  %v570 = vpop.f32.mrf.mxu0
  %v571 = vadd.f32 0.0, %v570
  %v572 = vpop.f32.mrf.mxu0
  %v573 = vadd.f32 0.0, %v572
  %574 = vmatmul.bf16.gmra.mxu0 %v374
  %v575 = vpop.f32.mrf.mxu0
  %v576 = vadd.f32 0.0, %v575
  %v577 = vpop.f32.mrf.mxu0
  %v578 = vadd.f32 0.0, %v577
  %579 = vmatmul.bf16.gmra.mxu0 %v375
  %v580 = vpop.f32.mrf.mxu0
  %v581 = vadd.f32 0.0, %v580
  %v582 = vpop.f32.mrf.mxu0
  %v583 = vadd.f32 0.0, %v582
  %584 = vmatmul.bf16.gmra.mxu0 %v376
  %v585 = vpop.f32.mrf.mxu0
  %v586 = vadd.f32 0.0, %v585
  %v587 = vpop.f32.mrf.mxu0
  %v588 = vadd.f32 0.0, %v587
  %589 = vmatmul.bf16.gmra.mxu0 %v377
  %v590 = vpop.f32.mrf.mxu0
  %v591 = vadd.f32 0.0, %v590
  %v592 = vpop.f32.mrf.mxu0
  %v593 = vadd.f32 0.0, %v592
  %594 = vmatmul.bf16.gmra.mxu0 %v378
  %v595 = vpop.f32.mrf.mxu0
  %v596 = vadd.f32 0.0, %v595
  %v597 = vpop.f32.mrf.mxu0
  %v598 = vadd.f32 0.0, %v597
  %599 = vmatmul.bf16.gmra.mxu0 %v379
  %v600 = vpop.f32.mrf.mxu0
  %v601 = vadd.f32 0.0, %v600
  %v602 = vpop.f32.mrf.mxu0
  %v603 = vadd.f32 0.0, %v602
  %604 = vmatmul.bf16.gmra.mxu0 %v380
  %v605 = vpop.f32.mrf.mxu0
  %v606 = vadd.f32 0.0, %v605
  %v607 = vpop.f32.mrf.mxu0
  %v608 = vadd.f32 0.0, %v607
  %609 = vmatmul.bf16.gmra.mxu0 %v381
  %v610 = vpop.f32.mrf.mxu0
  %v611 = vadd.f32 0.0, %v610
  %v612 = vpop.f32.mrf.mxu0
  %v613 = vadd.f32 0.0, %v612
  %614 = vmatmul.bf16.gmra.mxu0 %v382
  %v615 = vpop.f32.mrf.mxu0
  %v616 = vadd.f32 0.0, %v615
  %v617 = vpop.f32.mrf.mxu0
  %v618 = vadd.f32 0.0, %v617
  %619 = vmatmul.bf16.gmra.mxu0 %v383
  %v620 = vpop.f32.mrf.mxu0
  %v621 = vadd.f32 0.0, %v620
  %v622 = vpop.f32.mrf.mxu0
  %v623 = vadd.f32 0.0, %v622
  %624 = vmatmul.bf16.gmra.mxu0 %v384
  %v625 = vpop.f32.mrf.mxu0
  %v626 = vadd.f32 0.0, %v625
  %v627 = vpop.f32.mrf.mxu0
  %v628 = vadd.f32 0.0, %v627
  %629 = vmatmul.bf16.gmra.mxu0 %v385
  %v630 = vpop.f32.mrf.mxu0
  %v631 = vadd.f32 0.0, %v630
  %v632 = vpop.f32.mrf.mxu0
  %v633 = vadd.f32 0.0, %v632
  %634 = vdwg.mxu0
  %v635 = vadd.f32 %v82, %v476
  %v636 = vadd.f32 %v83, %v478
  %v637 = vadd.f32 %v84, %v481
  %v638 = vadd.f32 %v85, %v483
  %v639 = vadd.f32 %v86, %v486
  %v640 = vadd.f32 %v87, %v488
  %v641 = vadd.f32 %v88, %v491
  %v642 = vadd.f32 %v89, %v493
  %v643 = vadd.f32 %v90, %v496
  %v644 = vadd.f32 %v91, %v498
  %v645 = vadd.f32 %v92, %v501
  %v646 = vadd.f32 %v93, %v503
  %v647 = vadd.f32 %v94, %v506
  %v648 = vadd.f32 %v95, %v508
  %v649 = vadd.f32 %v96, %v511
  %v650 = vadd.f32 %v97, %v513
  %v651 = vadd.f32 %v98, %v516
  %v652 = vadd.f32 %v99, %v518
  %v653 = vadd.f32 %v100, %v521
  %v654 = vadd.f32 %v101, %v523
  %v655 = vadd.f32 %v102, %v526
  %v656 = vadd.f32 %v103, %v528
  %v657 = vadd.f32 %v104, %v531
  %v658 = vadd.f32 %v105, %v533
  %v659 = vadd.f32 %v106, %v536
  %v660 = vadd.f32 %v107, %v538
  %v661 = vadd.f32 %v108, %v541
  %v662 = vadd.f32 %v109, %v543
  %v663 = vadd.f32 %v110, %v546
  %v664 = vadd.f32 %v111, %v548
  %v665 = vadd.f32 %v112, %v551
  %v666 = vadd.f32 %v113, %v553
  %v667 = vadd.f32 %v114, %v556
  %v668 = vadd.f32 %v115, %v558
  %v669 = vadd.f32 %v116, %v561
  %v670 = vadd.f32 %v117, %v563
  %v671 = vadd.f32 %v118, %v566
  %v672 = vadd.f32 %v119, %v568
  %v673 = vadd.f32 %v120, %v571
  %v674 = vadd.f32 %v121, %v573
  %v675 = vadd.f32 %v122, %v576
  %v676 = vadd.f32 %v123, %v578
  %v677 = vadd.f32 %v124, %v581
  %v678 = vadd.f32 %v125, %v583
  %v679 = vadd.f32 %v126, %v586
  %v680 = vadd.f32 %v127, %v588
  %v681 = vadd.f32 %v128, %v591
  %v682 = vadd.f32 %v129, %v593
  %v683 = vadd.f32 %v130, %v596
  %v684 = vadd.f32 %v131, %v598
  %v685 = vadd.f32 %v132, %v601
  %v686 = vadd.f32 %v133, %v603
  %v687 = vadd.f32 %v134, %v606
  %v688 = vadd.f32 %v135, %v608
  %v689 = vadd.f32 %v136, %v611
  %v690 = vadd.f32 %v137, %v613
  %v691 = vadd.f32 %v138, %v616
  %v692 = vadd.f32 %v139, %v618
  %v693 = vadd.f32 %v140, %v621
  %v694 = vadd.f32 %v141, %v623
  %v695 = vadd.f32 %v142, %v626
  %v696 = vadd.f32 %v143, %v628
  %v697 = vadd.f32 %v144, %v631
  %v698 = vadd.f32 %v145, %v633
  %699 = vst [vmem:[#allocation2] sm:$0xff] %v635
  %700 = vst [vmem:[#allocation2 + $0x8] sm:$0xff] %v636
  %701 = vst [vmem:[#allocation2 + $0x10] sm:$0xff] %v637
  %702 = vst [vmem:[#allocation2 + $0x18] sm:$0xff] %v638
  %703 = vst [vmem:[#allocation2 + $0x20] sm:$0xff] %v639
  %704 = vst [vmem:[#allocation2 + $0x28] sm:$0xff] %v640
  %705 = vst [vmem:[#allocation2 + $0x30] sm:$0xff] %v641
  %706 = vst [vmem:[#allocation2 + $0x38] sm:$0xff] %v642
  %707 = vst [vmem:[#allocation2 + $0x40] sm:$0xff] %v643
  %708 = vst [vmem:[#allocation2 + $0x48] sm:$0xff] %v644
  %709 = vst [vmem:[#allocation2 + $0x50] sm:$0xff] %v645
  %710 = vst [vmem:[#allocation2 + $0x58] sm:$0xff] %v646
  %711 = vst [vmem:[#allocation2 + $0x60] sm:$0xff] %v647
  %712 = vst [vmem:[#allocation2 + $0x68] sm:$0xff] %v648
  %713 = vst [vmem:[#allocation2 + $0x70] sm:$0xff] %v649
  %714 = vst [vmem:[#allocation2 + $0x78] sm:$0xff] %v650
  %715 = vst [vmem:[#allocation2 + $0x80] sm:$0xff] %v651
  %716 = vst [vmem:[#allocation2 + $0x88] sm:$0xff] %v652
  %717 = vst [vmem:[#allocation2 + $0x90] sm:$0xff] %v653
  %718 = vst [vmem:[#allocation2 + $0x98] sm:$0xff] %v654
  %719 = vst [vmem:[#allocation2 + $0xa0] sm:$0xff] %v655
  %720 = vst [vmem:[#allocation2 + $0xa8] sm:$0xff] %v656
  %721 = vst [vmem:[#allocation2 + $0xb0] sm:$0xff] %v657
  %722 = vst [vmem:[#allocation2 + $0xb8] sm:$0xff] %v658
  %723 = vst [vmem:[#allocation2 + $0xc0] sm:$0xff] %v659
  %724 = vst [vmem:[#allocation2 + $0xc8] sm:$0xff] %v660
  %725 = vst [vmem:[#allocation2 + $0xd0] sm:$0xff] %v661
  %726 = vst [vmem:[#allocation2 + $0xd8] sm:$0xff] %v662
  %727 = vst [vmem:[#allocation2 + $0xe0] sm:$0xff] %v663
  %728 = vst [vmem:[#allocation2 + $0xe8] sm:$0xff] %v664
  %729 = vst [vmem:[#allocation2 + $0xf0] sm:$0xff] %v665
  %730 = vst [vmem:[#allocation2 + $0xf8] sm:$0xff] %v666
  %731 = vst [vmem:[#allocation2 + $0x100] sm:$0xff] %v667
  %732 = vst [vmem:[#allocation2 + $0x108] sm:$0xff] %v668
  %733 = vst [vmem:[#allocation2 + $0x110] sm:$0xff] %v669
  %734 = vst [vmem:[#allocation2 + $0x118] sm:$0xff] %v670
  %735 = vst [vmem:[#allocation2 + $0x120] sm:$0xff] %v671
  %736 = vst [vmem:[#allocation2 + $0x128] sm:$0xff] %v672
  %737 = vst [vmem:[#allocation2 + $0x130] sm:$0xff] %v673
  %738 = vst [vmem:[#allocation2 + $0x138] sm:$0xff] %v674
  %739 = vst [vmem:[#allocation2 + $0x140] sm:$0xff] %v675
  %740 = vst [vmem:[#allocation2 + $0x148] sm:$0xff] %v676
  %741 = vst [vmem:[#allocation2 + $0x150] sm:$0xff] %v677
  %742 = vst [vmem:[#allocation2 + $0x158] sm:$0xff] %v678
  %743 = vst [vmem:[#allocation2 + $0x160] sm:$0xff] %v679
  %744 = vst [vmem:[#allocation2 + $0x168] sm:$0xff] %v680
  %745 = vst [vmem:[#allocation2 + $0x170] sm:$0xff] %v681
  %746 = vst [vmem:[#allocation2 + $0x178] sm:$0xff] %v682
  %747 = vst [vmem:[#allocation2 + $0x180] sm:$0xff] %v683
  %748 = vst [vmem:[#allocation2 + $0x188] sm:$0xff] %v684
  %749 = vst [vmem:[#allocation2 + $0x190] sm:$0xff] %v685
  %750 = vst [vmem:[#allocation2 + $0x198] sm:$0xff] %v686
  %751 = vst [vmem:[#allocation2 + $0x1a0] sm:$0xff] %v687
  %752 = vst [vmem:[#allocation2 + $0x1a8] sm:$0xff] %v688
  %753 = vst [vmem:[#allocation2 + $0x1b0] sm:$0xff] %v689
  %754 = vst [vmem:[#allocation2 + $0x1b8] sm:$0xff] %v690
  %755 = vst [vmem:[#allocation2 + $0x1c0] sm:$0xff] %v691
  %756 = vst [vmem:[#allocation2 + $0x1c8] sm:$0xff] %v692
  %757 = vst [vmem:[#allocation2 + $0x1d0] sm:$0xff] %v693
  %758 = vst [vmem:[#allocation2 + $0x1d8] sm:$0xff] %v694
  %759 = vst [vmem:[#allocation2 + $0x1e0] sm:$0xff] %v695
  %760 = vst [vmem:[#allocation2 + $0x1e8] sm:$0xff] %v696
  %761 = vst [vmem:[#allocation2 + $0x1f0] sm:$0xff] %v697
  %762 = vst [vmem:[#allocation2 + $0x1f8] sm:$0xff] %v698
  // Predicated region
  $region18: #{deform_conv2d_pack_forward.2} parent=0 // pred_check
    %p763 = pneg %p14
  $region19: #{deform_conv2d_pack_forward.2} parent=0 // pred_check_branch
    %765 = sbr.rel (%p763) target = $region21
  $region20: #{deform_conv2d_pack_forward.2} parent=0 // pred_region
    %v766 = vld [vmem:[#allocation2] sm:$0xff]
    %v767 = vld [vmem:[#allocation2 + $0x8] sm:$0xff]
    %v768 = vld [vmem:[#allocation2 + $0x10] sm:$0xff]
    %v769 = vld [vmem:[#allocation2 + $0x18] sm:$0xff]
    %v770 = vld [vmem:[#allocation2 + $0x20] sm:$0xff]
    %v771 = vld [vmem:[#allocation2 + $0x28] sm:$0xff]
    %v772 = vld [vmem:[#allocation2 + $0x30] sm:$0xff]
    %v773 = vld [vmem:[#allocation2 + $0x38] sm:$0xff]
    %v774 = vld [vmem:[#allocation2 + $0x40] sm:$0xff]
    %v775 = vld [vmem:[#allocation2 + $0x48] sm:$0xff]
    %v776 = vld [vmem:[#allocation2 + $0x50] sm:$0xff]
    %v777 = vld [vmem:[#allocation2 + $0x58] sm:$0xff]
    %v778 = vld [vmem:[#allocation2 + $0x60] sm:$0xff]
    %v779 = vld [vmem:[#allocation2 + $0x68] sm:$0xff]
    %v780 = vld [vmem:[#allocation2 + $0x70] sm:$0xff]
    %v781 = vld [vmem:[#allocation2 + $0x78] sm:$0xff]
    %v782 = vld [vmem:[#allocation2 + $0x80] sm:$0xff]
    %v783 = vld [vmem:[#allocation2 + $0x88] sm:$0xff]
    %v784 = vld [vmem:[#allocation2 + $0x90] sm:$0xff]
    %v785 = vld [vmem:[#allocation2 + $0x98] sm:$0xff]
    %v786 = vld [vmem:[#allocation2 + $0xa0] sm:$0xff]
    %v787 = vld [vmem:[#allocation2 + $0xa8] sm:$0xff]
    %v788 = vld [vmem:[#allocation2 + $0xb0] sm:$0xff]
    %v789 = vld [vmem:[#allocation2 + $0xb8] sm:$0xff]
    %v790 = vld [vmem:[#allocation2 + $0xc0] sm:$0xff]
    %v791 = vld [vmem:[#allocation2 + $0xc8] sm:$0xff]
    %v792 = vld [vmem:[#allocation2 + $0xd0] sm:$0xff]
    %v793 = vld [vmem:[#allocation2 + $0xd8] sm:$0xff]
    %v794 = vld [vmem:[#allocation2 + $0xe0] sm:$0xff]
    %v795 = vld [vmem:[#allocation2 + $0xe8] sm:$0xff]
    %v796 = vld [vmem:[#allocation2 + $0xf0] sm:$0xff]
    %v797 = vld [vmem:[#allocation2 + $0xf8] sm:$0xff]
    %v798 = vld [vmem:[#allocation2 + $0x100] sm:$0xff]
    %v799 = vld [vmem:[#allocation2 + $0x108] sm:$0xff]
    %v800 = vld [vmem:[#allocation2 + $0x110] sm:$0xff]
    %v801 = vld [vmem:[#allocation2 + $0x118] sm:$0xff]
    %v802 = vld [vmem:[#allocation2 + $0x120] sm:$0xff]
    %v803 = vld [vmem:[#allocation2 + $0x128] sm:$0xff]
    %v804 = vld [vmem:[#allocation2 + $0x130] sm:$0xff]
    %v805 = vld [vmem:[#allocation2 + $0x138] sm:$0xff]
    %v806 = vld [vmem:[#allocation2 + $0x140] sm:$0xff]
    %v807 = vld [vmem:[#allocation2 + $0x148] sm:$0xff]
    %v808 = vld [vmem:[#allocation2 + $0x150] sm:$0xff]
    %v809 = vld [vmem:[#allocation2 + $0x158] sm:$0xff]
    %v810 = vld [vmem:[#allocation2 + $0x160] sm:$0xff]
    %v811 = vld [vmem:[#allocation2 + $0x168] sm:$0xff]
    %v812 = vld [vmem:[#allocation2 + $0x170] sm:$0xff]
    %v813 = vld [vmem:[#allocation2 + $0x178] sm:$0xff]
    %v814 = vld [vmem:[#allocation2 + $0x180] sm:$0xff]
    %v815 = vld [vmem:[#allocation2 + $0x188] sm:$0xff]
    %v816 = vld [vmem:[#allocation2 + $0x190] sm:$0xff]
    %v817 = vld [vmem:[#allocation2 + $0x198] sm:$0xff]
    %v818 = vld [vmem:[#allocation2 + $0x1a0] sm:$0xff]
    %v819 = vld [vmem:[#allocation2 + $0x1a8] sm:$0xff]
    %v820 = vld [vmem:[#allocation2 + $0x1b0] sm:$0xff]
    %v821 = vld [vmem:[#allocation2 + $0x1b8] sm:$0xff]
    %v822 = vld [vmem:[#allocation2 + $0x1c0] sm:$0xff]
    %v823 = vld [vmem:[#allocation2 + $0x1c8] sm:$0xff]
    %v824 = vld [vmem:[#allocation2 + $0x1d0] sm:$0xff]
    %v825 = vld [vmem:[#allocation2 + $0x1d8] sm:$0xff]
    %v826 = vld [vmem:[#allocation2 + $0x1e0] sm:$0xff]
    %v827 = vld [vmem:[#allocation2 + $0x1e8] sm:$0xff]
    %v828 = vld [vmem:[#allocation2 + $0x1f0] sm:$0xff]
    %v829 = vld [vmem:[#allocation2 + $0x1f8] sm:$0xff]
    %v830 = vld [vmem:[%s2] sm:$0x1]
    %v832 = vperm.slane %v830, 0
    %v834 = vadd.f32 %v766, %v832
    %v835 = vadd.f32 %v767, %v832
    %v836 = vadd.f32 %v768, %v832
    %v837 = vadd.f32 %v769, %v832
    %v838 = vadd.f32 %v770, %v832
    %v839 = vadd.f32 %v771, %v832
    %v840 = vadd.f32 %v772, %v832
    %v841 = vadd.f32 %v773, %v832
    %v842 = vadd.f32 %v774, %v832
    %v843 = vadd.f32 %v775, %v832
    %v844 = vadd.f32 %v776, %v832
    %v845 = vadd.f32 %v777, %v832
    %v846 = vadd.f32 %v778, %v832
    %v847 = vadd.f32 %v779, %v832
    %v848 = vadd.f32 %v780, %v832
    %v849 = vadd.f32 %v781, %v832
    %v850 = vadd.f32 %v782, %v832
    %v851 = vadd.f32 %v783, %v832
    %v852 = vadd.f32 %v784, %v832
    %v853 = vadd.f32 %v785, %v832
    %v854 = vadd.f32 %v786, %v832
    %v855 = vadd.f32 %v787, %v832
    %v856 = vadd.f32 %v788, %v832
    %v857 = vadd.f32 %v789, %v832
    %v858 = vadd.f32 %v790, %v832
    %v859 = vadd.f32 %v791, %v832
    %v860 = vadd.f32 %v792, %v832
    %v861 = vadd.f32 %v793, %v832
    %v862 = vadd.f32 %v794, %v832
    %v863 = vadd.f32 %v795, %v832
    %v864 = vadd.f32 %v796, %v832
    %v865 = vadd.f32 %v797, %v832
    %v866 = vadd.f32 %v798, %v832
    %v867 = vadd.f32 %v799, %v832
    %v868 = vadd.f32 %v800, %v832
    %v869 = vadd.f32 %v801, %v832
    %v870 = vadd.f32 %v802, %v832
    %v871 = vadd.f32 %v803, %v832
    %v872 = vadd.f32 %v804, %v832
    %v873 = vadd.f32 %v805, %v832
    %v874 = vadd.f32 %v806, %v832
    %v875 = vadd.f32 %v807, %v832
    %v876 = vadd.f32 %v808, %v832
    %v877 = vadd.f32 %v809, %v832
    %v878 = vadd.f32 %v810, %v832
    %v879 = vadd.f32 %v811, %v832
    %v880 = vadd.f32 %v812, %v832
    %v881 = vadd.f32 %v813, %v832
    %v882 = vadd.f32 %v814, %v832
    %v883 = vadd.f32 %v815, %v832
    %v884 = vadd.f32 %v816, %v832
    %v885 = vadd.f32 %v817, %v832
    %v886 = vadd.f32 %v818, %v832
    %v887 = vadd.f32 %v819, %v832
    %v888 = vadd.f32 %v820, %v832
    %v889 = vadd.f32 %v821, %v832
    %v890 = vadd.f32 %v822, %v832
    %v891 = vadd.f32 %v823, %v832
    %v892 = vadd.f32 %v824, %v832
    %v893 = vadd.f32 %v825, %v832
    %v894 = vadd.f32 %v826, %v832
    %v895 = vadd.f32 %v827, %v832
    %v896 = vadd.f32 %v828, %v832
    %v897 = vadd.f32 %v829, %v832
    %898 = vst [vmem:[%s3] sm:$0xff] %v834
    %899 = vst [vmem:[%s3 + $0x8] sm:$0xff] %v835
    %900 = vst [vmem:[%s3 + $0x10] sm:$0xff] %v836
    %901 = vst [vmem:[%s3 + $0x18] sm:$0xff] %v837
    %902 = vst [vmem:[%s3 + $0x20] sm:$0xff] %v838
    %903 = vst [vmem:[%s3 + $0x28] sm:$0xff] %v839
    %904 = vst [vmem:[%s3 + $0x30] sm:$0xff] %v840
    %905 = vst [vmem:[%s3 + $0x38] sm:$0xff] %v841
    %906 = vst [vmem:[%s3 + $0x40] sm:$0xff] %v842
    %907 = vst [vmem:[%s3 + $0x48] sm:$0xff] %v843
    %908 = vst [vmem:[%s3 + $0x50] sm:$0xff] %v844
    %909 = vst [vmem:[%s3 + $0x58] sm:$0xff] %v845
    %910 = vst [vmem:[%s3 + $0x60] sm:$0xff] %v846
    %911 = vst [vmem:[%s3 + $0x68] sm:$0xff] %v847
    %912 = vst [vmem:[%s3 + $0x70] sm:$0xff] %v848
    %913 = vst [vmem:[%s3 + $0x78] sm:$0xff] %v849
    %914 = vst [vmem:[%s3 + $0x80] sm:$0xff] %v850
    %915 = vst [vmem:[%s3 + $0x88] sm:$0xff] %v851
    %916 = vst [vmem:[%s3 + $0x90] sm:$0xff] %v852
    %917 = vst [vmem:[%s3 + $0x98] sm:$0xff] %v853
    %918 = vst [vmem:[%s3 + $0xa0] sm:$0xff] %v854
    %919 = vst [vmem:[%s3 + $0xa8] sm:$0xff] %v855
    %920 = vst [vmem:[%s3 + $0xb0] sm:$0xff] %v856
    %921 = vst [vmem:[%s3 + $0xb8] sm:$0xff] %v857
    %922 = vst [vmem:[%s3 + $0xc0] sm:$0xff] %v858
    %923 = vst [vmem:[%s3 + $0xc8] sm:$0xff] %v859
    %924 = vst [vmem:[%s3 + $0xd0] sm:$0xff] %v860
    %925 = vst [vmem:[%s3 + $0xd8] sm:$0xff] %v861
    %926 = vst [vmem:[%s3 + $0xe0] sm:$0xff] %v862
    %927 = vst [vmem:[%s3 + $0xe8] sm:$0xff] %v863
    %928 = vst [vmem:[%s3 + $0xf0] sm:$0xff] %v864
    %929 = vst [vmem:[%s3 + $0xf8] sm:$0xff] %v865
    %930 = vst [vmem:[%s3 + $0x100] sm:$0xff] %v866
    %931 = vst [vmem:[%s3 + $0x108] sm:$0xff] %v867
    %932 = vst [vmem:[%s3 + $0x110] sm:$0xff] %v868
    %933 = vst [vmem:[%s3 + $0x118] sm:$0xff] %v869
    %934 = vst [vmem:[%s3 + $0x120] sm:$0xff] %v870
    %935 = vst [vmem:[%s3 + $0x128] sm:$0xff] %v871
    %936 = vst [vmem:[%s3 + $0x130] sm:$0xff] %v872
    %937 = vst [vmem:[%s3 + $0x138] sm:$0xff] %v873
    %938 = vst [vmem:[%s3 + $0x140] sm:$0xff] %v874
    %939 = vst [vmem:[%s3 + $0x148] sm:$0xff] %v875
    %940 = vst [vmem:[%s3 + $0x150] sm:$0xff] %v876
    %941 = vst [vmem:[%s3 + $0x158] sm:$0xff] %v877
    %942 = vst [vmem:[%s3 + $0x160] sm:$0xff] %v878
    %943 = vst [vmem:[%s3 + $0x168] sm:$0xff] %v879
    %944 = vst [vmem:[%s3 + $0x170] sm:$0xff] %v880
    %945 = vst [vmem:[%s3 + $0x178] sm:$0xff] %v881
    %946 = vst [vmem:[%s3 + $0x180] sm:$0xff] %v882
    %947 = vst [vmem:[%s3 + $0x188] sm:$0xff] %v883
    %948 = vst [vmem:[%s3 + $0x190] sm:$0xff] %v884
    %949 = vst [vmem:[%s3 + $0x198] sm:$0xff] %v885
    %950 = vst [vmem:[%s3 + $0x1a0] sm:$0xff] %v886
    %951 = vst [vmem:[%s3 + $0x1a8] sm:$0xff] %v887
    %952 = vst [vmem:[%s3 + $0x1b0] sm:$0xff] %v888
    %953 = vst [vmem:[%s3 + $0x1b8] sm:$0xff] %v889
    %954 = vst [vmem:[%s3 + $0x1c0] sm:$0xff] %v890
    %955 = vst [vmem:[%s3 + $0x1c8] sm:$0xff] %v891
    %956 = vst [vmem:[%s3 + $0x1d0] sm:$0xff] %v892
    %957 = vst [vmem:[%s3 + $0x1d8] sm:$0xff] %v893
    %958 = vst [vmem:[%s3 + $0x1e0] sm:$0xff] %v894
    %959 = vst [vmem:[%s3 + $0x1e8] sm:$0xff] %v895
    %960 = vst [vmem:[%s3 + $0x1f0] sm:$0xff] %v896
    %961 = vst [vmem:[%s3 + $0x1f8] sm:$0xff] %v897
  $region21: #{deform_conv2d_pack_forward.2} parent=0 // pred_fallthru
    _
  // Predicated region
  $region22: #{deform_conv2d_pack_forward.2} parent=0 // pred_check
    _
  $region23: #{deform_conv2d_pack_forward.2} parent=0 // pred_check_branch
    %963 = sbr.rel (0) target = $region25
  $region24: #{deform_conv2d_pack_forward.2} parent=0 // pred_region
    _
  $region25: #{deform_conv2d_pack_forward.2} parent=0 // pred_fallthru
    _
  // Predicated region
  $region26: #{deform_conv2d_pack_forward.2} parent=0 // pred_check
    _
  $region27: #{deform_conv2d_pack_forward.2} parent=0 // pred_check_branch
    %965 = sbr.rel (0) target = $region29
  $region28: #{deform_conv2d_pack_forward.2} parent=0 // pred_region
    _
  $region29: #{deform_conv2d_pack_forward.2} parent=0 // pred_fallthru
    _

// kernel: deform_conv2d_pack_forward.3
$region0: #{deform_conv2d_pack_forward.3}
  #allocation0 [shape = 'u32[]', space=smem, size = 0x4, offset = 0x4, fixed_abs, tag = 'smem constant byte address 0x4 - core index']
  #allocation1 [shape = 'u32[72,128]{1,0:T(1,128)}', space=vmem, size = 0x9000, scoped, tag = 'internal scratch']
  #allocation2 [shape = 'f32[512,128]{1,0:T(8,128)}', space=vmem, size = 0x40000, scoped, tag = 'scratch operand']
  %s0 = inlined_call_operand.vmem [shape: bf16[512,128], index: 0, kind: input, shape index: {}]
  %s1 = inlined_call_operand.vmem [shape: bf16[128,128], index: 1, kind: input, shape index: {}]
  %s2 = inlined_call_operand.vmem [shape: f32[512,128], index: 2, kind: output, shape index: {}]
  %s3 = sld [smem:[#allocation0]]
  $region26: #{deform_conv2d_pack_forward.3} parent=0
    _
  %s5 = ssub.s32 1, %s3
  %s6 = scalar_select 0, %s5, %s3
  // Predicated region
  $region2: #{deform_conv2d_pack_forward.3} parent=0 // pred_check
    _
  $region3: #{deform_conv2d_pack_forward.3} parent=0 // pred_check_branch
    %8 = sbr.rel (0) target = $region5
  $region4: #{deform_conv2d_pack_forward.3} parent=0 // pred_region
    _
  $region5: #{deform_conv2d_pack_forward.3} parent=0 // pred_fallthru
    _
  // Predicated region
  $region6: #{deform_conv2d_pack_forward.3} parent=0 // pred_check
    _
  $region7: #{deform_conv2d_pack_forward.3} parent=0 // pred_check_branch
    %10 = sbr.rel (0) target = $region9
  $region8: #{deform_conv2d_pack_forward.3} parent=0 // pred_region
    _
  $region9: #{deform_conv2d_pack_forward.3} parent=0 // pred_fallthru
    _
  %p11 = scmp.eq.s32.totalorder 0, 0
  // Predicated region
  $region10: #{deform_conv2d_pack_forward.3} parent=0 // pred_check
    %p12 = pneg %p11
  $region11: #{deform_conv2d_pack_forward.3} parent=0 // pred_check_branch
    %14 = sbr.rel (%p12) target = $region13
  $region12: #{deform_conv2d_pack_forward.3} parent=0 // pred_region
    %15 = vst [vmem:[#allocation2] sm:$0xff] 0.0
    %16 = vst [vmem:[#allocation2 + $0x8] sm:$0xff] 0.0
    %17 = vst [vmem:[#allocation2 + $0x10] sm:$0xff] 0.0
    %18 = vst [vmem:[#allocation2 + $0x18] sm:$0xff] 0.0
    %19 = vst [vmem:[#allocation2 + $0x20] sm:$0xff] 0.0
    %20 = vst [vmem:[#allocation2 + $0x28] sm:$0xff] 0.0
    %21 = vst [vmem:[#allocation2 + $0x30] sm:$0xff] 0.0
    %22 = vst [vmem:[#allocation2 + $0x38] sm:$0xff] 0.0
    %23 = vst [vmem:[#allocation2 + $0x40] sm:$0xff] 0.0
    %24 = vst [vmem:[#allocation2 + $0x48] sm:$0xff] 0.0
    %25 = vst [vmem:[#allocation2 + $0x50] sm:$0xff] 0.0
    %26 = vst [vmem:[#allocation2 + $0x58] sm:$0xff] 0.0
    %27 = vst [vmem:[#allocation2 + $0x60] sm:$0xff] 0.0
    %28 = vst [vmem:[#allocation2 + $0x68] sm:$0xff] 0.0
    %29 = vst [vmem:[#allocation2 + $0x70] sm:$0xff] 0.0
    %30 = vst [vmem:[#allocation2 + $0x78] sm:$0xff] 0.0
    %31 = vst [vmem:[#allocation2 + $0x80] sm:$0xff] 0.0
    %32 = vst [vmem:[#allocation2 + $0x88] sm:$0xff] 0.0
    %33 = vst [vmem:[#allocation2 + $0x90] sm:$0xff] 0.0
    %34 = vst [vmem:[#allocation2 + $0x98] sm:$0xff] 0.0
    %35 = vst [vmem:[#allocation2 + $0xa0] sm:$0xff] 0.0
    %36 = vst [vmem:[#allocation2 + $0xa8] sm:$0xff] 0.0
    %37 = vst [vmem:[#allocation2 + $0xb0] sm:$0xff] 0.0
    %38 = vst [vmem:[#allocation2 + $0xb8] sm:$0xff] 0.0
    %39 = vst [vmem:[#allocation2 + $0xc0] sm:$0xff] 0.0
    %40 = vst [vmem:[#allocation2 + $0xc8] sm:$0xff] 0.0
    %41 = vst [vmem:[#allocation2 + $0xd0] sm:$0xff] 0.0
    %42 = vst [vmem:[#allocation2 + $0xd8] sm:$0xff] 0.0
    %43 = vst [vmem:[#allocation2 + $0xe0] sm:$0xff] 0.0
    %44 = vst [vmem:[#allocation2 + $0xe8] sm:$0xff] 0.0
    %45 = vst [vmem:[#allocation2 + $0xf0] sm:$0xff] 0.0
    %46 = vst [vmem:[#allocation2 + $0xf8] sm:$0xff] 0.0
    %47 = vst [vmem:[#allocation2 + $0x100] sm:$0xff] 0.0
    %48 = vst [vmem:[#allocation2 + $0x108] sm:$0xff] 0.0
    %49 = vst [vmem:[#allocation2 + $0x110] sm:$0xff] 0.0
    %50 = vst [vmem:[#allocation2 + $0x118] sm:$0xff] 0.0
    %51 = vst [vmem:[#allocation2 + $0x120] sm:$0xff] 0.0
    %52 = vst [vmem:[#allocation2 + $0x128] sm:$0xff] 0.0
    %53 = vst [vmem:[#allocation2 + $0x130] sm:$0xff] 0.0
    %54 = vst [vmem:[#allocation2 + $0x138] sm:$0xff] 0.0
    %55 = vst [vmem:[#allocation2 + $0x140] sm:$0xff] 0.0
    %56 = vst [vmem:[#allocation2 + $0x148] sm:$0xff] 0.0
    %57 = vst [vmem:[#allocation2 + $0x150] sm:$0xff] 0.0
    %58 = vst [vmem:[#allocation2 + $0x158] sm:$0xff] 0.0
    %59 = vst [vmem:[#allocation2 + $0x160] sm:$0xff] 0.0
    %60 = vst [vmem:[#allocation2 + $0x168] sm:$0xff] 0.0
    %61 = vst [vmem:[#allocation2 + $0x170] sm:$0xff] 0.0
    %62 = vst [vmem:[#allocation2 + $0x178] sm:$0xff] 0.0
    %63 = vst [vmem:[#allocation2 + $0x180] sm:$0xff] 0.0
    %64 = vst [vmem:[#allocation2 + $0x188] sm:$0xff] 0.0
    %65 = vst [vmem:[#allocation2 + $0x190] sm:$0xff] 0.0
    %66 = vst [vmem:[#allocation2 + $0x198] sm:$0xff] 0.0
    %67 = vst [vmem:[#allocation2 + $0x1a0] sm:$0xff] 0.0
    %68 = vst [vmem:[#allocation2 + $0x1a8] sm:$0xff] 0.0
    %69 = vst [vmem:[#allocation2 + $0x1b0] sm:$0xff] 0.0
    %70 = vst [vmem:[#allocation2 + $0x1b8] sm:$0xff] 0.0
    %71 = vst [vmem:[#allocation2 + $0x1c0] sm:$0xff] 0.0
    %72 = vst [vmem:[#allocation2 + $0x1c8] sm:$0xff] 0.0
    %73 = vst [vmem:[#allocation2 + $0x1d0] sm:$0xff] 0.0
    %74 = vst [vmem:[#allocation2 + $0x1d8] sm:$0xff] 0.0
    %75 = vst [vmem:[#allocation2 + $0x1e0] sm:$0xff] 0.0
    %76 = vst [vmem:[#allocation2 + $0x1e8] sm:$0xff] 0.0
    %77 = vst [vmem:[#allocation2 + $0x1f0] sm:$0xff] 0.0
    %78 = vst [vmem:[#allocation2 + $0x1f8] sm:$0xff] 0.0
  $region13: #{deform_conv2d_pack_forward.3} parent=0 // pred_fallthru
    _
  %v79 = vld [vmem:[#allocation2] sm:$0xff]
  %v80 = vld [vmem:[#allocation2 + $0x8] sm:$0xff]
  %v81 = vld [vmem:[#allocation2 + $0x10] sm:$0xff]
  %v82 = vld [vmem:[#allocation2 + $0x18] sm:$0xff]
  %v83 = vld [vmem:[#allocation2 + $0x20] sm:$0xff]
  %v84 = vld [vmem:[#allocation2 + $0x28] sm:$0xff]
  %v85 = vld [vmem:[#allocation2 + $0x30] sm:$0xff]
  %v86 = vld [vmem:[#allocation2 + $0x38] sm:$0xff]
  %v87 = vld [vmem:[#allocation2 + $0x40] sm:$0xff]
  %v88 = vld [vmem:[#allocation2 + $0x48] sm:$0xff]
  %v89 = vld [vmem:[#allocation2 + $0x50] sm:$0xff]
  %v90 = vld [vmem:[#allocation2 + $0x58] sm:$0xff]
  %v91 = vld [vmem:[#allocation2 + $0x60] sm:$0xff]
  %v92 = vld [vmem:[#allocation2 + $0x68] sm:$0xff]
  %v93 = vld [vmem:[#allocation2 + $0x70] sm:$0xff]
  %v94 = vld [vmem:[#allocation2 + $0x78] sm:$0xff]
  %v95 = vld [vmem:[#allocation2 + $0x80] sm:$0xff]
  %v96 = vld [vmem:[#allocation2 + $0x88] sm:$0xff]
  %v97 = vld [vmem:[#allocation2 + $0x90] sm:$0xff]
  %v98 = vld [vmem:[#allocation2 + $0x98] sm:$0xff]
  %v99 = vld [vmem:[#allocation2 + $0xa0] sm:$0xff]
  %v100 = vld [vmem:[#allocation2 + $0xa8] sm:$0xff]
  %v101 = vld [vmem:[#allocation2 + $0xb0] sm:$0xff]
  %v102 = vld [vmem:[#allocation2 + $0xb8] sm:$0xff]
  %v103 = vld [vmem:[#allocation2 + $0xc0] sm:$0xff]
  %v104 = vld [vmem:[#allocation2 + $0xc8] sm:$0xff]
  %v105 = vld [vmem:[#allocation2 + $0xd0] sm:$0xff]
  %v106 = vld [vmem:[#allocation2 + $0xd8] sm:$0xff]
  %v107 = vld [vmem:[#allocation2 + $0xe0] sm:$0xff]
  %v108 = vld [vmem:[#allocation2 + $0xe8] sm:$0xff]
  %v109 = vld [vmem:[#allocation2 + $0xf0] sm:$0xff]
  %v110 = vld [vmem:[#allocation2 + $0xf8] sm:$0xff]
  %v111 = vld [vmem:[#allocation2 + $0x100] sm:$0xff]
  %v112 = vld [vmem:[#allocation2 + $0x108] sm:$0xff]
  %v113 = vld [vmem:[#allocation2 + $0x110] sm:$0xff]
  %v114 = vld [vmem:[#allocation2 + $0x118] sm:$0xff]
  %v115 = vld [vmem:[#allocation2 + $0x120] sm:$0xff]
  %v116 = vld [vmem:[#allocation2 + $0x128] sm:$0xff]
  %v117 = vld [vmem:[#allocation2 + $0x130] sm:$0xff]
  %v118 = vld [vmem:[#allocation2 + $0x138] sm:$0xff]
  %v119 = vld [vmem:[#allocation2 + $0x140] sm:$0xff]
  %v120 = vld [vmem:[#allocation2 + $0x148] sm:$0xff]
  %v121 = vld [vmem:[#allocation2 + $0x150] sm:$0xff]
  %v122 = vld [vmem:[#allocation2 + $0x158] sm:$0xff]
  %v123 = vld [vmem:[#allocation2 + $0x160] sm:$0xff]
  %v124 = vld [vmem:[#allocation2 + $0x168] sm:$0xff]
  %v125 = vld [vmem:[#allocation2 + $0x170] sm:$0xff]
  %v126 = vld [vmem:[#allocation2 + $0x178] sm:$0xff]
  %v127 = vld [vmem:[#allocation2 + $0x180] sm:$0xff]
  %v128 = vld [vmem:[#allocation2 + $0x188] sm:$0xff]
  %v129 = vld [vmem:[#allocation2 + $0x190] sm:$0xff]
  %v130 = vld [vmem:[#allocation2 + $0x198] sm:$0xff]
  %v131 = vld [vmem:[#allocation2 + $0x1a0] sm:$0xff]
  %v132 = vld [vmem:[#allocation2 + $0x1a8] sm:$0xff]
  %v133 = vld [vmem:[#allocation2 + $0x1b0] sm:$0xff]
  %v134 = vld [vmem:[#allocation2 + $0x1b8] sm:$0xff]
  %v135 = vld [vmem:[#allocation2 + $0x1c0] sm:$0xff]
  %v136 = vld [vmem:[#allocation2 + $0x1c8] sm:$0xff]
  %v137 = vld [vmem:[#allocation2 + $0x1d0] sm:$0xff]
  %v138 = vld [vmem:[#allocation2 + $0x1d8] sm:$0xff]
  %v139 = vld [vmem:[#allocation2 + $0x1e0] sm:$0xff]
  %v140 = vld [vmem:[#allocation2 + $0x1e8] sm:$0xff]
  %v141 = vld [vmem:[#allocation2 + $0x1f0] sm:$0xff]
  %v142 = vld [vmem:[#allocation2 + $0x1f8] sm:$0xff]
  %v143 = vld [vmem:[%s0] sm:$0xf]
  %v144 = vld [vmem:[%s0 + $0x4] sm:$0xf]
  %v145 = vld [vmem:[%s0 + $0x8] sm:$0xf]
  %v146 = vld [vmem:[%s0 + $0xc] sm:$0xf]
  %v147 = vld [vmem:[%s0 + $0x10] sm:$0xf]
  %v148 = vld [vmem:[%s0 + $0x14] sm:$0xf]
  %v149 = vld [vmem:[%s0 + $0x18] sm:$0xf]
  %v150 = vld [vmem:[%s0 + $0x1c] sm:$0xf]
  %v151 = vld [vmem:[%s0 + $0x20] sm:$0xf]
  %v152 = vld [vmem:[%s0 + $0x24] sm:$0xf]
  %v153 = vld [vmem:[%s0 + $0x28] sm:$0xf]
  %v154 = vld [vmem:[%s0 + $0x2c] sm:$0xf]
  %v155 = vld [vmem:[%s0 + $0x30] sm:$0xf]
  %v156 = vld [vmem:[%s0 + $0x34] sm:$0xf]
  %v157 = vld [vmem:[%s0 + $0x38] sm:$0xf]
  %v158 = vld [vmem:[%s0 + $0x3c] sm:$0xf]
  %v159 = vld [vmem:[%s0 + $0x40] sm:$0xf]
  %v160 = vld [vmem:[%s0 + $0x44] sm:$0xf]
  %v161 = vld [vmem:[%s0 + $0x48] sm:$0xf]
  %v162 = vld [vmem:[%s0 + $0x4c] sm:$0xf]
  %v163 = vld [vmem:[%s0 + $0x50] sm:$0xf]
  %v164 = vld [vmem:[%s0 + $0x54] sm:$0xf]
  %v165 = vld [vmem:[%s0 + $0x58] sm:$0xf]
  %v166 = vld [vmem:[%s0 + $0x5c] sm:$0xf]
  %v167 = vld [vmem:[%s0 + $0x60] sm:$0xf]
  %v168 = vld [vmem:[%s0 + $0x64] sm:$0xf]
  %v169 = vld [vmem:[%s0 + $0x68] sm:$0xf]
  %v170 = vld [vmem:[%s0 + $0x6c] sm:$0xf]
  %v171 = vld [vmem:[%s0 + $0x70] sm:$0xf]
  %v172 = vld [vmem:[%s0 + $0x74] sm:$0xf]
  %v173 = vld [vmem:[%s0 + $0x78] sm:$0xf]
  %v174 = vld [vmem:[%s0 + $0x7c] sm:$0xf]
  %v175 = vld [vmem:[%s0 + $0x80] sm:$0xf]
  %v176 = vld [vmem:[%s0 + $0x84] sm:$0xf]
  %v177 = vld [vmem:[%s0 + $0x88] sm:$0xf]
  %v178 = vld [vmem:[%s0 + $0x8c] sm:$0xf]
  %v179 = vld [vmem:[%s0 + $0x90] sm:$0xf]
  %v180 = vld [vmem:[%s0 + $0x94] sm:$0xf]
  %v181 = vld [vmem:[%s0 + $0x98] sm:$0xf]
  %v182 = vld [vmem:[%s0 + $0x9c] sm:$0xf]
  %v183 = vld [vmem:[%s0 + $0xa0] sm:$0xf]
  %v184 = vld [vmem:[%s0 + $0xa4] sm:$0xf]
  %v185 = vld [vmem:[%s0 + $0xa8] sm:$0xf]
  %v186 = vld [vmem:[%s0 + $0xac] sm:$0xf]
  %v187 = vld [vmem:[%s0 + $0xb0] sm:$0xf]
  %v188 = vld [vmem:[%s0 + $0xb4] sm:$0xf]
  %v189 = vld [vmem:[%s0 + $0xb8] sm:$0xf]
  %v190 = vld [vmem:[%s0 + $0xbc] sm:$0xf]
  %v191 = vld [vmem:[%s0 + $0xc0] sm:$0xf]
  %v192 = vld [vmem:[%s0 + $0xc4] sm:$0xf]
  %v193 = vld [vmem:[%s0 + $0xc8] sm:$0xf]
  %v194 = vld [vmem:[%s0 + $0xcc] sm:$0xf]
  %v195 = vld [vmem:[%s0 + $0xd0] sm:$0xf]
  %v196 = vld [vmem:[%s0 + $0xd4] sm:$0xf]
  %v197 = vld [vmem:[%s0 + $0xd8] sm:$0xf]
  %v198 = vld [vmem:[%s0 + $0xdc] sm:$0xf]
  %v199 = vld [vmem:[%s0 + $0xe0] sm:$0xf]
  %v200 = vld [vmem:[%s0 + $0xe4] sm:$0xf]
  %v201 = vld [vmem:[%s0 + $0xe8] sm:$0xf]
  %v202 = vld [vmem:[%s0 + $0xec] sm:$0xf]
  %v203 = vld [vmem:[%s0 + $0xf0] sm:$0xf]
  %v204 = vld [vmem:[%s0 + $0xf4] sm:$0xf]
  %v205 = vld [vmem:[%s0 + $0xf8] sm:$0xf]
  %v206 = vld [vmem:[%s0 + $0xfc] sm:$0xf]
  %v207 = vld [vmem:[%s1] sm:$0xf]
  %v208 = vld [vmem:[%s1 + $0x4] sm:$0xf]
  %v209 = vld [vmem:[%s1 + $0x8] sm:$0xf]
  %v210 = vld [vmem:[%s1 + $0xc] sm:$0xf]
  %v211 = vld [vmem:[%s1 + $0x10] sm:$0xf]
  %v212 = vld [vmem:[%s1 + $0x14] sm:$0xf]
  %v213 = vld [vmem:[%s1 + $0x18] sm:$0xf]
  %v214 = vld [vmem:[%s1 + $0x1c] sm:$0xf]
  %v215 = vld [vmem:[%s1 + $0x20] sm:$0xf]
  %v216 = vld [vmem:[%s1 + $0x24] sm:$0xf]
  %v217 = vld [vmem:[%s1 + $0x28] sm:$0xf]
  %v218 = vld [vmem:[%s1 + $0x2c] sm:$0xf]
  %v219 = vld [vmem:[%s1 + $0x30] sm:$0xf]
  %v220 = vld [vmem:[%s1 + $0x34] sm:$0xf]
  %v221 = vld [vmem:[%s1 + $0x38] sm:$0xf]
  %v222 = vld [vmem:[%s1 + $0x3c] sm:$0xf]
  %v287 = vunpack.c.l.b16 %v143
  %v288 = vunpack.c.l.b16 %v144
  %v289 = vunpack.c.l.b16 %v145
  %v290 = vunpack.c.l.b16 %v146
  %v291 = vunpack.c.l.b16 %v147
  %v292 = vunpack.c.l.b16 %v148
  %v293 = vunpack.c.l.b16 %v149
  %v294 = vunpack.c.l.b16 %v150
  %v295 = vunpack.c.l.b16 %v151
  %v296 = vunpack.c.l.b16 %v152
  %v297 = vunpack.c.l.b16 %v153
  %v298 = vunpack.c.l.b16 %v154
  %v299 = vunpack.c.l.b16 %v155
  %v300 = vunpack.c.l.b16 %v156
  %v301 = vunpack.c.l.b16 %v157
  %v302 = vunpack.c.l.b16 %v158
  %v303 = vunpack.c.l.b16 %v159
  %v304 = vunpack.c.l.b16 %v160
  %v305 = vunpack.c.l.b16 %v161
  %v306 = vunpack.c.l.b16 %v162
  %v307 = vunpack.c.l.b16 %v163
  %v308 = vunpack.c.l.b16 %v164
  %v309 = vunpack.c.l.b16 %v165
  %v310 = vunpack.c.l.b16 %v166
  %v311 = vunpack.c.l.b16 %v167
  %v312 = vunpack.c.l.b16 %v168
  %v313 = vunpack.c.l.b16 %v169
  %v314 = vunpack.c.l.b16 %v170
  %v315 = vunpack.c.l.b16 %v171
  %v316 = vunpack.c.l.b16 %v172
  %v317 = vunpack.c.l.b16 %v173
  %v318 = vunpack.c.l.b16 %v174
  %v319 = vunpack.c.l.b16 %v175
  %v320 = vunpack.c.l.b16 %v176
  %v321 = vunpack.c.l.b16 %v177
  %v322 = vunpack.c.l.b16 %v178
  %v323 = vunpack.c.l.b16 %v179
  %v324 = vunpack.c.l.b16 %v180
  %v325 = vunpack.c.l.b16 %v181
  %v326 = vunpack.c.l.b16 %v182
  %v327 = vunpack.c.l.b16 %v183
  %v328 = vunpack.c.l.b16 %v184
  %v329 = vunpack.c.l.b16 %v185
  %v330 = vunpack.c.l.b16 %v186
  %v331 = vunpack.c.l.b16 %v187
  %v332 = vunpack.c.l.b16 %v188
  %v333 = vunpack.c.l.b16 %v189
  %v334 = vunpack.c.l.b16 %v190
  %v335 = vunpack.c.l.b16 %v191
  %v336 = vunpack.c.l.b16 %v192
  %v337 = vunpack.c.l.b16 %v193
  %v338 = vunpack.c.l.b16 %v194
  %v339 = vunpack.c.l.b16 %v195
  %v340 = vunpack.c.l.b16 %v196
  %v341 = vunpack.c.l.b16 %v197
  %v342 = vunpack.c.l.b16 %v198
  %v343 = vunpack.c.l.b16 %v199
  %v344 = vunpack.c.l.b16 %v200
  %v345 = vunpack.c.l.b16 %v201
  %v346 = vunpack.c.l.b16 %v202
  %v347 = vunpack.c.l.b16 %v203
  %v348 = vunpack.c.l.b16 %v204
  %v349 = vunpack.c.l.b16 %v205
  %v350 = vunpack.c.l.b16 %v206
  %v351 = vpack.c.b16 %v288, %v287
  %v352 = vpack.c.b16 %v290, %v289
  %v353 = vpack.c.b16 %v292, %v291
  %v354 = vpack.c.b16 %v294, %v293
  %v355 = vpack.c.b16 %v296, %v295
  %v356 = vpack.c.b16 %v298, %v297
  %v357 = vpack.c.b16 %v300, %v299
  %v358 = vpack.c.b16 %v302, %v301
  %v359 = vpack.c.b16 %v304, %v303
  %v360 = vpack.c.b16 %v306, %v305
  %v361 = vpack.c.b16 %v308, %v307
  %v362 = vpack.c.b16 %v310, %v309
  %v363 = vpack.c.b16 %v312, %v311
  %v364 = vpack.c.b16 %v314, %v313
  %v365 = vpack.c.b16 %v316, %v315
  %v366 = vpack.c.b16 %v318, %v317
  %v367 = vpack.c.b16 %v320, %v319
  %v368 = vpack.c.b16 %v322, %v321
  %v369 = vpack.c.b16 %v324, %v323
  %v370 = vpack.c.b16 %v326, %v325
  %v371 = vpack.c.b16 %v328, %v327
  %v372 = vpack.c.b16 %v330, %v329
  %v373 = vpack.c.b16 %v332, %v331
  %v374 = vpack.c.b16 %v334, %v333
  %v375 = vpack.c.b16 %v336, %v335
  %v376 = vpack.c.b16 %v338, %v337
  %v377 = vpack.c.b16 %v340, %v339
  %v378 = vpack.c.b16 %v342, %v341
  %v379 = vpack.c.b16 %v344, %v343
  %v380 = vpack.c.b16 %v346, %v345
  %v381 = vpack.c.b16 %v348, %v347
  %v382 = vpack.c.b16 %v350, %v349
  %v431 = vunpack.c.l.b16 %v207
  %v432 = vunpack.c.l.b16 %v208
  %v433 = vunpack.c.l.b16 %v209
  %v434 = vunpack.c.l.b16 %v210
  %v435 = vunpack.c.l.b16 %v211
  %v436 = vunpack.c.l.b16 %v212
  %v437 = vunpack.c.l.b16 %v213
  %v438 = vunpack.c.l.b16 %v214
  %v439 = vunpack.c.l.b16 %v215
  %v440 = vunpack.c.l.b16 %v216
  %v441 = vunpack.c.l.b16 %v217
  %v442 = vunpack.c.l.b16 %v218
  %v443 = vunpack.c.l.b16 %v219
  %v444 = vunpack.c.l.b16 %v220
  %v445 = vunpack.c.l.b16 %v221
  %v446 = vunpack.c.l.b16 %v222
  %v447 = vpack.c.b16 %v432, %v431
  %v448 = vpack.c.b16 %v434, %v433
  %v449 = vpack.c.b16 %v436, %v435
  %v450 = vpack.c.b16 %v438, %v437
  %v451 = vpack.c.b16 %v440, %v439
  %v452 = vpack.c.b16 %v442, %v441
  %v453 = vpack.c.b16 %v444, %v443
  %v454 = vpack.c.b16 %v446, %v445
  %463 = vmatpush.bf16.msra.mxu0 %v454
  %464 = vmatpush.bf16.msra.mxu0 %v453
  %465 = vmatpush.bf16.msra.mxu0 %v452
  %466 = vmatpush.bf16.msra.mxu0 %v451
  %467 = vmatpush.bf16.msra.mxu0 %v450
  %468 = vmatpush.bf16.msra.mxu0 %v449
  %469 = vmatpush.bf16.msra.mxu0 %v448
  %470 = vmatpush.bf16.msra.mxu0 %v447
  %471 = vmatmul.bf16.gmra.mxu0 %v351
  %v472 = vpop.f32.mrf.mxu0
  %v473 = vadd.f32 0.0, %v472
  %v474 = vpop.f32.mrf.mxu0
  %v475 = vadd.f32 0.0, %v474
  %476 = vmatmul.bf16.gmra.mxu0 %v352
  %v477 = vpop.f32.mrf.mxu0
  %v478 = vadd.f32 0.0, %v477
  %v479 = vpop.f32.mrf.mxu0
  %v480 = vadd.f32 0.0, %v479
  %481 = vmatmul.bf16.gmra.mxu0 %v353
  %v482 = vpop.f32.mrf.mxu0
  %v483 = vadd.f32 0.0, %v482
  %v484 = vpop.f32.mrf.mxu0
  %v485 = vadd.f32 0.0, %v484
  %486 = vmatmul.bf16.gmra.mxu0 %v354
  %v487 = vpop.f32.mrf.mxu0
  %v488 = vadd.f32 0.0, %v487
  %v489 = vpop.f32.mrf.mxu0
  %v490 = vadd.f32 0.0, %v489
  %491 = vmatmul.bf16.gmra.mxu0 %v355
  %v492 = vpop.f32.mrf.mxu0
  %v493 = vadd.f32 0.0, %v492
  %v494 = vpop.f32.mrf.mxu0
  %v495 = vadd.f32 0.0, %v494
  %496 = vmatmul.bf16.gmra.mxu0 %v356
  %v497 = vpop.f32.mrf.mxu0
  %v498 = vadd.f32 0.0, %v497
  %v499 = vpop.f32.mrf.mxu0
  %v500 = vadd.f32 0.0, %v499
  %501 = vmatmul.bf16.gmra.mxu0 %v357
  %v502 = vpop.f32.mrf.mxu0
  %v503 = vadd.f32 0.0, %v502
  %v504 = vpop.f32.mrf.mxu0
  %v505 = vadd.f32 0.0, %v504
  %506 = vmatmul.bf16.gmra.mxu0 %v358
  %v507 = vpop.f32.mrf.mxu0
  %v508 = vadd.f32 0.0, %v507
  %v509 = vpop.f32.mrf.mxu0
  %v510 = vadd.f32 0.0, %v509
  %511 = vmatmul.bf16.gmra.mxu0 %v359
  %v512 = vpop.f32.mrf.mxu0
  %v513 = vadd.f32 0.0, %v512
  %v514 = vpop.f32.mrf.mxu0
  %v515 = vadd.f32 0.0, %v514
  %516 = vmatmul.bf16.gmra.mxu0 %v360
  %v517 = vpop.f32.mrf.mxu0
  %v518 = vadd.f32 0.0, %v517
  %v519 = vpop.f32.mrf.mxu0
  %v520 = vadd.f32 0.0, %v519
  %521 = vmatmul.bf16.gmra.mxu0 %v361
  %v522 = vpop.f32.mrf.mxu0
  %v523 = vadd.f32 0.0, %v522
  %v524 = vpop.f32.mrf.mxu0
  %v525 = vadd.f32 0.0, %v524
  %526 = vmatmul.bf16.gmra.mxu0 %v362
  %v527 = vpop.f32.mrf.mxu0
  %v528 = vadd.f32 0.0, %v527
  %v529 = vpop.f32.mrf.mxu0
  %v530 = vadd.f32 0.0, %v529
  %531 = vmatmul.bf16.gmra.mxu0 %v363
  %v532 = vpop.f32.mrf.mxu0
  %v533 = vadd.f32 0.0, %v532
  %v534 = vpop.f32.mrf.mxu0
  %v535 = vadd.f32 0.0, %v534
  %536 = vmatmul.bf16.gmra.mxu0 %v364
  %v537 = vpop.f32.mrf.mxu0
  %v538 = vadd.f32 0.0, %v537
  %v539 = vpop.f32.mrf.mxu0
  %v540 = vadd.f32 0.0, %v539
  %541 = vmatmul.bf16.gmra.mxu0 %v365
  %v542 = vpop.f32.mrf.mxu0
  %v543 = vadd.f32 0.0, %v542
  %v544 = vpop.f32.mrf.mxu0
  %v545 = vadd.f32 0.0, %v544
  %546 = vmatmul.bf16.gmra.mxu0 %v366
  %v547 = vpop.f32.mrf.mxu0
  %v548 = vadd.f32 0.0, %v547
  %v549 = vpop.f32.mrf.mxu0
  %v550 = vadd.f32 0.0, %v549
  %551 = vmatmul.bf16.gmra.mxu0 %v367
  %v552 = vpop.f32.mrf.mxu0
  %v553 = vadd.f32 0.0, %v552
  %v554 = vpop.f32.mrf.mxu0
  %v555 = vadd.f32 0.0, %v554
  %556 = vmatmul.bf16.gmra.mxu0 %v368
  %v557 = vpop.f32.mrf.mxu0
  %v558 = vadd.f32 0.0, %v557
  %v559 = vpop.f32.mrf.mxu0
  %v560 = vadd.f32 0.0, %v559
  %561 = vmatmul.bf16.gmra.mxu0 %v369
  %v562 = vpop.f32.mrf.mxu0
  %v563 = vadd.f32 0.0, %v562
  %v564 = vpop.f32.mrf.mxu0
  %v565 = vadd.f32 0.0, %v564
  %566 = vmatmul.bf16.gmra.mxu0 %v370
  %v567 = vpop.f32.mrf.mxu0
  %v568 = vadd.f32 0.0, %v567
  %v569 = vpop.f32.mrf.mxu0
  %v570 = vadd.f32 0.0, %v569
  %571 = vmatmul.bf16.gmra.mxu0 %v371
  %v572 = vpop.f32.mrf.mxu0
  %v573 = vadd.f32 0.0, %v572
  %v574 = vpop.f32.mrf.mxu0
  %v575 = vadd.f32 0.0, %v574
  %576 = vmatmul.bf16.gmra.mxu0 %v372
  %v577 = vpop.f32.mrf.mxu0
  %v578 = vadd.f32 0.0, %v577
  %v579 = vpop.f32.mrf.mxu0
  %v580 = vadd.f32 0.0, %v579
  %581 = vmatmul.bf16.gmra.mxu0 %v373
  %v582 = vpop.f32.mrf.mxu0
  %v583 = vadd.f32 0.0, %v582
  %v584 = vpop.f32.mrf.mxu0
  %v585 = vadd.f32 0.0, %v584
  %586 = vmatmul.bf16.gmra.mxu0 %v374
  %v587 = vpop.f32.mrf.mxu0
  %v588 = vadd.f32 0.0, %v587
  %v589 = vpop.f32.mrf.mxu0
  %v590 = vadd.f32 0.0, %v589
  %591 = vmatmul.bf16.gmra.mxu0 %v375
  %v592 = vpop.f32.mrf.mxu0
  %v593 = vadd.f32 0.0, %v592
  %v594 = vpop.f32.mrf.mxu0
  %v595 = vadd.f32 0.0, %v594
  %596 = vmatmul.bf16.gmra.mxu0 %v376
  %v597 = vpop.f32.mrf.mxu0
  %v598 = vadd.f32 0.0, %v597
  %v599 = vpop.f32.mrf.mxu0
  %v600 = vadd.f32 0.0, %v599
  %601 = vmatmul.bf16.gmra.mxu0 %v377
  %v602 = vpop.f32.mrf.mxu0
  %v603 = vadd.f32 0.0, %v602
  %v604 = vpop.f32.mrf.mxu0
  %v605 = vadd.f32 0.0, %v604
  %606 = vmatmul.bf16.gmra.mxu0 %v378
  %v607 = vpop.f32.mrf.mxu0
  %v608 = vadd.f32 0.0, %v607
  %v609 = vpop.f32.mrf.mxu0
  %v610 = vadd.f32 0.0, %v609
  %611 = vmatmul.bf16.gmra.mxu0 %v379
  %v612 = vpop.f32.mrf.mxu0
  %v613 = vadd.f32 0.0, %v612
  %v614 = vpop.f32.mrf.mxu0
  %v615 = vadd.f32 0.0, %v614
  %616 = vmatmul.bf16.gmra.mxu0 %v380
  %v617 = vpop.f32.mrf.mxu0
  %v618 = vadd.f32 0.0, %v617
  %v619 = vpop.f32.mrf.mxu0
  %v620 = vadd.f32 0.0, %v619
  %621 = vmatmul.bf16.gmra.mxu0 %v381
  %v622 = vpop.f32.mrf.mxu0
  %v623 = vadd.f32 0.0, %v622
  %v624 = vpop.f32.mrf.mxu0
  %v625 = vadd.f32 0.0, %v624
  %626 = vmatmul.bf16.gmra.mxu0 %v382
  %v627 = vpop.f32.mrf.mxu0
  %v628 = vadd.f32 0.0, %v627
  %v629 = vpop.f32.mrf.mxu0
  %v630 = vadd.f32 0.0, %v629
  %631 = vdwg.mxu0
  %v632 = vadd.f32 %v79, %v473
  %v633 = vadd.f32 %v80, %v475
  %v634 = vadd.f32 %v81, %v478
  %v635 = vadd.f32 %v82, %v480
  %v636 = vadd.f32 %v83, %v483
  %v637 = vadd.f32 %v84, %v485
  %v638 = vadd.f32 %v85, %v488
  %v639 = vadd.f32 %v86, %v490
  %v640 = vadd.f32 %v87, %v493
  %v641 = vadd.f32 %v88, %v495
  %v642 = vadd.f32 %v89, %v498
  %v643 = vadd.f32 %v90, %v500
  %v644 = vadd.f32 %v91, %v503
  %v645 = vadd.f32 %v92, %v505
  %v646 = vadd.f32 %v93, %v508
  %v647 = vadd.f32 %v94, %v510
  %v648 = vadd.f32 %v95, %v513
  %v649 = vadd.f32 %v96, %v515
  %v650 = vadd.f32 %v97, %v518
  %v651 = vadd.f32 %v98, %v520
  %v652 = vadd.f32 %v99, %v523
  %v653 = vadd.f32 %v100, %v525
  %v654 = vadd.f32 %v101, %v528
  %v655 = vadd.f32 %v102, %v530
  %v656 = vadd.f32 %v103, %v533
  %v657 = vadd.f32 %v104, %v535
  %v658 = vadd.f32 %v105, %v538
  %v659 = vadd.f32 %v106, %v540
  %v660 = vadd.f32 %v107, %v543
  %v661 = vadd.f32 %v108, %v545
  %v662 = vadd.f32 %v109, %v548
  %v663 = vadd.f32 %v110, %v550
  %v664 = vadd.f32 %v111, %v553
  %v665 = vadd.f32 %v112, %v555
  %v666 = vadd.f32 %v113, %v558
  %v667 = vadd.f32 %v114, %v560
  %v668 = vadd.f32 %v115, %v563
  %v669 = vadd.f32 %v116, %v565
  %v670 = vadd.f32 %v117, %v568
  %v671 = vadd.f32 %v118, %v570
  %v672 = vadd.f32 %v119, %v573
  %v673 = vadd.f32 %v120, %v575
  %v674 = vadd.f32 %v121, %v578
  %v675 = vadd.f32 %v122, %v580
  %v676 = vadd.f32 %v123, %v583
  %v677 = vadd.f32 %v124, %v585
  %v678 = vadd.f32 %v125, %v588
  %v679 = vadd.f32 %v126, %v590
  %v680 = vadd.f32 %v127, %v593
  %v681 = vadd.f32 %v128, %v595
  %v682 = vadd.f32 %v129, %v598
  %v683 = vadd.f32 %v130, %v600
  %v684 = vadd.f32 %v131, %v603
  %v685 = vadd.f32 %v132, %v605
  %v686 = vadd.f32 %v133, %v608
  %v687 = vadd.f32 %v134, %v610
  %v688 = vadd.f32 %v135, %v613
  %v689 = vadd.f32 %v136, %v615
  %v690 = vadd.f32 %v137, %v618
  %v691 = vadd.f32 %v138, %v620
  %v692 = vadd.f32 %v139, %v623
  %v693 = vadd.f32 %v140, %v625
  %v694 = vadd.f32 %v141, %v628
  %v695 = vadd.f32 %v142, %v630
  %696 = vst [vmem:[#allocation2] sm:$0xff] %v632
  %697 = vst [vmem:[#allocation2 + $0x8] sm:$0xff] %v633
  %698 = vst [vmem:[#allocation2 + $0x10] sm:$0xff] %v634
  %699 = vst [vmem:[#allocation2 + $0x18] sm:$0xff] %v635
  %700 = vst [vmem:[#allocation2 + $0x20] sm:$0xff] %v636
  %701 = vst [vmem:[#allocation2 + $0x28] sm:$0xff] %v637
  %702 = vst [vmem:[#allocation2 + $0x30] sm:$0xff] %v638
  %703 = vst [vmem:[#allocation2 + $0x38] sm:$0xff] %v639
  %704 = vst [vmem:[#allocation2 + $0x40] sm:$0xff] %v640
  %705 = vst [vmem:[#allocation2 + $0x48] sm:$0xff] %v641
  %706 = vst [vmem:[#allocation2 + $0x50] sm:$0xff] %v642
  %707 = vst [vmem:[#allocation2 + $0x58] sm:$0xff] %v643
  %708 = vst [vmem:[#allocation2 + $0x60] sm:$0xff] %v644
  %709 = vst [vmem:[#allocation2 + $0x68] sm:$0xff] %v645
  %710 = vst [vmem:[#allocation2 + $0x70] sm:$0xff] %v646
  %711 = vst [vmem:[#allocation2 + $0x78] sm:$0xff] %v647
  %712 = vst [vmem:[#allocation2 + $0x80] sm:$0xff] %v648
  %713 = vst [vmem:[#allocation2 + $0x88] sm:$0xff] %v649
  %714 = vst [vmem:[#allocation2 + $0x90] sm:$0xff] %v650
  %715 = vst [vmem:[#allocation2 + $0x98] sm:$0xff] %v651
  %716 = vst [vmem:[#allocation2 + $0xa0] sm:$0xff] %v652
  %717 = vst [vmem:[#allocation2 + $0xa8] sm:$0xff] %v653
  %718 = vst [vmem:[#allocation2 + $0xb0] sm:$0xff] %v654
  %719 = vst [vmem:[#allocation2 + $0xb8] sm:$0xff] %v655
  %720 = vst [vmem:[#allocation2 + $0xc0] sm:$0xff] %v656
  %721 = vst [vmem:[#allocation2 + $0xc8] sm:$0xff] %v657
  %722 = vst [vmem:[#allocation2 + $0xd0] sm:$0xff] %v658
  %723 = vst [vmem:[#allocation2 + $0xd8] sm:$0xff] %v659
  %724 = vst [vmem:[#allocation2 + $0xe0] sm:$0xff] %v660
  %725 = vst [vmem:[#allocation2 + $0xe8] sm:$0xff] %v661
  %726 = vst [vmem:[#allocation2 + $0xf0] sm:$0xff] %v662
  %727 = vst [vmem:[#allocation2 + $0xf8] sm:$0xff] %v663
  %728 = vst [vmem:[#allocation2 + $0x100] sm:$0xff] %v664
  %729 = vst [vmem:[#allocation2 + $0x108] sm:$0xff] %v665
  %730 = vst [vmem:[#allocation2 + $0x110] sm:$0xff] %v666
  %731 = vst [vmem:[#allocation2 + $0x118] sm:$0xff] %v667
  %732 = vst [vmem:[#allocation2 + $0x120] sm:$0xff] %v668
  %733 = vst [vmem:[#allocation2 + $0x128] sm:$0xff] %v669
  %734 = vst [vmem:[#allocation2 + $0x130] sm:$0xff] %v670
  %735 = vst [vmem:[#allocation2 + $0x138] sm:$0xff] %v671
  %736 = vst [vmem:[#allocation2 + $0x140] sm:$0xff] %v672
  %737 = vst [vmem:[#allocation2 + $0x148] sm:$0xff] %v673
  %738 = vst [vmem:[#allocation2 + $0x150] sm:$0xff] %v674
  %739 = vst [vmem:[#allocation2 + $0x158] sm:$0xff] %v675
  %740 = vst [vmem:[#allocation2 + $0x160] sm:$0xff] %v676
  %741 = vst [vmem:[#allocation2 + $0x168] sm:$0xff] %v677
  %742 = vst [vmem:[#allocation2 + $0x170] sm:$0xff] %v678
  %743 = vst [vmem:[#allocation2 + $0x178] sm:$0xff] %v679
  %744 = vst [vmem:[#allocation2 + $0x180] sm:$0xff] %v680
  %745 = vst [vmem:[#allocation2 + $0x188] sm:$0xff] %v681
  %746 = vst [vmem:[#allocation2 + $0x190] sm:$0xff] %v682
  %747 = vst [vmem:[#allocation2 + $0x198] sm:$0xff] %v683
  %748 = vst [vmem:[#allocation2 + $0x1a0] sm:$0xff] %v684
  %749 = vst [vmem:[#allocation2 + $0x1a8] sm:$0xff] %v685
  %750 = vst [vmem:[#allocation2 + $0x1b0] sm:$0xff] %v686
  %751 = vst [vmem:[#allocation2 + $0x1b8] sm:$0xff] %v687
  %752 = vst [vmem:[#allocation2 + $0x1c0] sm:$0xff] %v688
  %753 = vst [vmem:[#allocation2 + $0x1c8] sm:$0xff] %v689
  %754 = vst [vmem:[#allocation2 + $0x1d0] sm:$0xff] %v690
  %755 = vst [vmem:[#allocation2 + $0x1d8] sm:$0xff] %v691
  %756 = vst [vmem:[#allocation2 + $0x1e0] sm:$0xff] %v692
  %757 = vst [vmem:[#allocation2 + $0x1e8] sm:$0xff] %v693
  %758 = vst [vmem:[#allocation2 + $0x1f0] sm:$0xff] %v694
  %759 = vst [vmem:[#allocation2 + $0x1f8] sm:$0xff] %v695
  // Predicated region
  $region14: #{deform_conv2d_pack_forward.3} parent=0 // pred_check
    %p760 = pneg %p11
  $region15: #{deform_conv2d_pack_forward.3} parent=0 // pred_check_branch
    %762 = sbr.rel (%p760) target = $region17
  $region16: #{deform_conv2d_pack_forward.3} parent=0 // pred_region
    %v763 = vld [vmem:[#allocation2] sm:$0xff]
    %v764 = vld [vmem:[#allocation2 + $0x8] sm:$0xff]
    %v765 = vld [vmem:[#allocation2 + $0x10] sm:$0xff]
    %v766 = vld [vmem:[#allocation2 + $0x18] sm:$0xff]
    %v767 = vld [vmem:[#allocation2 + $0x20] sm:$0xff]
    %v768 = vld [vmem:[#allocation2 + $0x28] sm:$0xff]
    %v769 = vld [vmem:[#allocation2 + $0x30] sm:$0xff]
    %v770 = vld [vmem:[#allocation2 + $0x38] sm:$0xff]
    %v771 = vld [vmem:[#allocation2 + $0x40] sm:$0xff]
    %v772 = vld [vmem:[#allocation2 + $0x48] sm:$0xff]
    %v773 = vld [vmem:[#allocation2 + $0x50] sm:$0xff]
    %v774 = vld [vmem:[#allocation2 + $0x58] sm:$0xff]
    %v775 = vld [vmem:[#allocation2 + $0x60] sm:$0xff]
    %v776 = vld [vmem:[#allocation2 + $0x68] sm:$0xff]
    %v777 = vld [vmem:[#allocation2 + $0x70] sm:$0xff]
    %v778 = vld [vmem:[#allocation2 + $0x78] sm:$0xff]
    %v779 = vld [vmem:[#allocation2 + $0x80] sm:$0xff]
    %v780 = vld [vmem:[#allocation2 + $0x88] sm:$0xff]
    %v781 = vld [vmem:[#allocation2 + $0x90] sm:$0xff]
    %v782 = vld [vmem:[#allocation2 + $0x98] sm:$0xff]
    %v783 = vld [vmem:[#allocation2 + $0xa0] sm:$0xff]
    %v784 = vld [vmem:[#allocation2 + $0xa8] sm:$0xff]
    %v785 = vld [vmem:[#allocation2 + $0xb0] sm:$0xff]
    %v786 = vld [vmem:[#allocation2 + $0xb8] sm:$0xff]
    %v787 = vld [vmem:[#allocation2 + $0xc0] sm:$0xff]
    %v788 = vld [vmem:[#allocation2 + $0xc8] sm:$0xff]
    %v789 = vld [vmem:[#allocation2 + $0xd0] sm:$0xff]
    %v790 = vld [vmem:[#allocation2 + $0xd8] sm:$0xff]
    %v791 = vld [vmem:[#allocation2 + $0xe0] sm:$0xff]
    %v792 = vld [vmem:[#allocation2 + $0xe8] sm:$0xff]
    %v793 = vld [vmem:[#allocation2 + $0xf0] sm:$0xff]
    %v794 = vld [vmem:[#allocation2 + $0xf8] sm:$0xff]
    %v795 = vld [vmem:[#allocation2 + $0x100] sm:$0xff]
    %v796 = vld [vmem:[#allocation2 + $0x108] sm:$0xff]
    %v797 = vld [vmem:[#allocation2 + $0x110] sm:$0xff]
    %v798 = vld [vmem:[#allocation2 + $0x118] sm:$0xff]
    %v799 = vld [vmem:[#allocation2 + $0x120] sm:$0xff]
    %v800 = vld [vmem:[#allocation2 + $0x128] sm:$0xff]
    %v801 = vld [vmem:[#allocation2 + $0x130] sm:$0xff]
    %v802 = vld [vmem:[#allocation2 + $0x138] sm:$0xff]
    %v803 = vld [vmem:[#allocation2 + $0x140] sm:$0xff]
    %v804 = vld [vmem:[#allocation2 + $0x148] sm:$0xff]
    %v805 = vld [vmem:[#allocation2 + $0x150] sm:$0xff]
    %v806 = vld [vmem:[#allocation2 + $0x158] sm:$0xff]
    %v807 = vld [vmem:[#allocation2 + $0x160] sm:$0xff]
    %v808 = vld [vmem:[#allocation2 + $0x168] sm:$0xff]
    %v809 = vld [vmem:[#allocation2 + $0x170] sm:$0xff]
    %v810 = vld [vmem:[#allocation2 + $0x178] sm:$0xff]
    %v811 = vld [vmem:[#allocation2 + $0x180] sm:$0xff]
    %v812 = vld [vmem:[#allocation2 + $0x188] sm:$0xff]
    %v813 = vld [vmem:[#allocation2 + $0x190] sm:$0xff]
    %v814 = vld [vmem:[#allocation2 + $0x198] sm:$0xff]
    %v815 = vld [vmem:[#allocation2 + $0x1a0] sm:$0xff]
    %v816 = vld [vmem:[#allocation2 + $0x1a8] sm:$0xff]
    %v817 = vld [vmem:[#allocation2 + $0x1b0] sm:$0xff]
    %v818 = vld [vmem:[#allocation2 + $0x1b8] sm:$0xff]
    %v819 = vld [vmem:[#allocation2 + $0x1c0] sm:$0xff]
    %v820 = vld [vmem:[#allocation2 + $0x1c8] sm:$0xff]
    %v821 = vld [vmem:[#allocation2 + $0x1d0] sm:$0xff]
    %v822 = vld [vmem:[#allocation2 + $0x1d8] sm:$0xff]
    %v823 = vld [vmem:[#allocation2 + $0x1e0] sm:$0xff]
    %v824 = vld [vmem:[#allocation2 + $0x1e8] sm:$0xff]
    %v825 = vld [vmem:[#allocation2 + $0x1f0] sm:$0xff]
    %v826 = vld [vmem:[#allocation2 + $0x1f8] sm:$0xff]
    %827 = vst [vmem:[%s2] sm:$0xff] %v763
    %828 = vst [vmem:[%s2 + $0x8] sm:$0xff] %v764
    %829 = vst [vmem:[%s2 + $0x10] sm:$0xff] %v765
    %830 = vst [vmem:[%s2 + $0x18] sm:$0xff] %v766
    %831 = vst [vmem:[%s2 + $0x20] sm:$0xff] %v767
    %832 = vst [vmem:[%s2 + $0x28] sm:$0xff] %v768
    %833 = vst [vmem:[%s2 + $0x30] sm:$0xff] %v769
    %834 = vst [vmem:[%s2 + $0x38] sm:$0xff] %v770
    %835 = vst [vmem:[%s2 + $0x40] sm:$0xff] %v771
    %836 = vst [vmem:[%s2 + $0x48] sm:$0xff] %v772
    %837 = vst [vmem:[%s2 + $0x50] sm:$0xff] %v773
    %838 = vst [vmem:[%s2 + $0x58] sm:$0xff] %v774
    %839 = vst [vmem:[%s2 + $0x60] sm:$0xff] %v775
    %840 = vst [vmem:[%s2 + $0x68] sm:$0xff] %v776
    %841 = vst [vmem:[%s2 + $0x70] sm:$0xff] %v777
    %842 = vst [vmem:[%s2 + $0x78] sm:$0xff] %v778
    %843 = vst [vmem:[%s2 + $0x80] sm:$0xff] %v779
    %844 = vst [vmem:[%s2 + $0x88] sm:$0xff] %v780
    %845 = vst [vmem:[%s2 + $0x90] sm:$0xff] %v781
    %846 = vst [vmem:[%s2 + $0x98] sm:$0xff] %v782
    %847 = vst [vmem:[%s2 + $0xa0] sm:$0xff] %v783
    %848 = vst [vmem:[%s2 + $0xa8] sm:$0xff] %v784
    %849 = vst [vmem:[%s2 + $0xb0] sm:$0xff] %v785
    %850 = vst [vmem:[%s2 + $0xb8] sm:$0xff] %v786
    %851 = vst [vmem:[%s2 + $0xc0] sm:$0xff] %v787
    %852 = vst [vmem:[%s2 + $0xc8] sm:$0xff] %v788
    %853 = vst [vmem:[%s2 + $0xd0] sm:$0xff] %v789
    %854 = vst [vmem:[%s2 + $0xd8] sm:$0xff] %v790
    %855 = vst [vmem:[%s2 + $0xe0] sm:$0xff] %v791
    %856 = vst [vmem:[%s2 + $0xe8] sm:$0xff] %v792
    %857 = vst [vmem:[%s2 + $0xf0] sm:$0xff] %v793
    %858 = vst [vmem:[%s2 + $0xf8] sm:$0xff] %v794
    %859 = vst [vmem:[%s2 + $0x100] sm:$0xff] %v795
    %860 = vst [vmem:[%s2 + $0x108] sm:$0xff] %v796
    %861 = vst [vmem:[%s2 + $0x110] sm:$0xff] %v797
    %862 = vst [vmem:[%s2 + $0x118] sm:$0xff] %v798
    %863 = vst [vmem:[%s2 + $0x120] sm:$0xff] %v799
    %864 = vst [vmem:[%s2 + $0x128] sm:$0xff] %v800
    %865 = vst [vmem:[%s2 + $0x130] sm:$0xff] %v801
    %866 = vst [vmem:[%s2 + $0x138] sm:$0xff] %v802
    %867 = vst [vmem:[%s2 + $0x140] sm:$0xff] %v803
    %868 = vst [vmem:[%s2 + $0x148] sm:$0xff] %v804
    %869 = vst [vmem:[%s2 + $0x150] sm:$0xff] %v805
    %870 = vst [vmem:[%s2 + $0x158] sm:$0xff] %v806
    %871 = vst [vmem:[%s2 + $0x160] sm:$0xff] %v807
    %872 = vst [vmem:[%s2 + $0x168] sm:$0xff] %v808
    %873 = vst [vmem:[%s2 + $0x170] sm:$0xff] %v809
    %874 = vst [vmem:[%s2 + $0x178] sm:$0xff] %v810
    %875 = vst [vmem:[%s2 + $0x180] sm:$0xff] %v811
    %876 = vst [vmem:[%s2 + $0x188] sm:$0xff] %v812
    %877 = vst [vmem:[%s2 + $0x190] sm:$0xff] %v813
    %878 = vst [vmem:[%s2 + $0x198] sm:$0xff] %v814
    %879 = vst [vmem:[%s2 + $0x1a0] sm:$0xff] %v815
    %880 = vst [vmem:[%s2 + $0x1a8] sm:$0xff] %v816
    %881 = vst [vmem:[%s2 + $0x1b0] sm:$0xff] %v817
    %882 = vst [vmem:[%s2 + $0x1b8] sm:$0xff] %v818
    %883 = vst [vmem:[%s2 + $0x1c0] sm:$0xff] %v819
    %884 = vst [vmem:[%s2 + $0x1c8] sm:$0xff] %v820
    %885 = vst [vmem:[%s2 + $0x1d0] sm:$0xff] %v821
    %886 = vst [vmem:[%s2 + $0x1d8] sm:$0xff] %v822
    %887 = vst [vmem:[%s2 + $0x1e0] sm:$0xff] %v823
    %888 = vst [vmem:[%s2 + $0x1e8] sm:$0xff] %v824
    %889 = vst [vmem:[%s2 + $0x1f0] sm:$0xff] %v825
    %890 = vst [vmem:[%s2 + $0x1f8] sm:$0xff] %v826
  $region17: #{deform_conv2d_pack_forward.3} parent=0 // pred_fallthru
    _
  // Predicated region
  $region18: #{deform_conv2d_pack_forward.3} parent=0 // pred_check
    _
  $region19: #{deform_conv2d_pack_forward.3} parent=0 // pred_check_branch
    %892 = sbr.rel (0) target = $region21
  $region20: #{deform_conv2d_pack_forward.3} parent=0 // pred_region
    _
  $region21: #{deform_conv2d_pack_forward.3} parent=0 // pred_fallthru
    _
  // Predicated region
  $region22: #{deform_conv2d_pack_forward.3} parent=0 // pred_check
    _
  $region23: #{deform_conv2d_pack_forward.3} parent=0 // pred_check_branch
    %894 = sbr.rel (0) target = $region25
  $region24: #{deform_conv2d_pack_forward.3} parent=0 // pred_region
    _
  $region25: #{deform_conv2d_pack_forward.3} parent=0 // pred_fallthru
    _

</llo_original>
